<compile_context>
chip_gen: v6e
topology: v6e:2x2x1
jax: 0.10.0
libtpu: 0.0.40
codegen_flags: <defaults>
</compile_context>

<pallas_src>
import math

import jax
import jax.numpy as jnp
from jax import lax
from jax.experimental import pallas as pl
from jax.experimental.pallas import tpu as pltpu

# ---- model / problem sizes (small, consistent with the module) -------------
NUM_LAYERS = 2
DIM_MODEL  = 32
NUM_HEAD   = 4
DIM_FF     = 64
DIM_LATENT = 16
SEQ        = 8
BATCH      = 2
HEAD_DIM   = DIM_MODEL // NUM_HEAD
LN_EPS     = 1e-5

LOG2_SEQ      = int(math.log2(SEQ))
LOG2_HEAD_DIM = int(math.log2(HEAD_DIM))
HS            = NUM_HEAD * SEQ           # expanded key axis (all heads)


def _layernorm(x, w, b):
    mu  = jnp.mean(x, axis=-1, keepdims=True)
    var = jnp.mean(jnp.square(x - mu), axis=-1, keepdims=True)
    return (x - mu) * jax.lax.rsqrt(var + LN_EPS) * w + b


# ---------------------------------------------------------------------------
# Single fused Pallas kernel: all encoder layers + VAE heads.
# No grid; every operand is a full-array VMEM block.
# ---------------------------------------------------------------------------
def fused_encoder_kernel(x_ref, wqkv_ref, wo_ref, w1_ref, w2_ref, vec_ref,
                         whead_ref, bhead_ref, out_ref):
    # (B, S, D) batch-major activation, flattened to (B*S, D) for all GEMMs.
    x = x_ref[...].reshape(BATCH * SEQ, DIM_MODEL)

    # --- masks for the merged-head attention (iota + shift, no constants) ---
    # head_mask[h*S + j, d] = 1  iff  lane d belongs to head h.
    rowg = jnp.right_shift(
        lax.broadcasted_iota(jnp.int32, (HS, DIM_MODEL), 0), LOG2_SEQ)
    colg = jnp.right_shift(
        lax.broadcasted_iota(jnp.int32, (HS, DIM_MODEL), 1), LOG2_HEAD_DIM)
    head_mask = jnp.where(rowg == colg, 1.0, 0.0).astype(jnp.float32)
    # gmat[a, c] = 1 iff a and c are in the same head block of S lanes
    # (p @ gmat broadcasts each head's softmax denominator to its own lanes).
    ga = jnp.right_shift(
        lax.broadcasted_iota(jnp.int32, (HS, HS), 0), LOG2_SEQ)
    gc = jnp.right_shift(
        lax.broadcasted_iota(jnp.int32, (HS, HS), 1), LOG2_SEQ)
    gmat = jnp.where(ga == gc, 1.0, 0.0).astype(jnp.float32)

    for l in range(NUM_LAYERS):
        wqkv = wqkv_ref[l]                     # (D, 3D)   q-cols pre-scaled
        wo   = wo_ref[l]                       # (D, D)
        w1   = w1_ref[l]                       # (D, FF)
        w2   = w2_ref[l]                       # (FF, D)
        vec  = vec_ref[l]                      # (8, 128) slab of vectors
        bqkv = vec[0:1, :3 * DIM_MODEL]
        bo   = vec[1:2, :DIM_MODEL]
        b1   = vec[2:3, :DIM_FF]
        b2   = vec[3:4, :DIM_MODEL]
        ln1w = vec[4:5, :DIM_MODEL]
        ln1b = vec[5:6, :DIM_MODEL]
        ln2w = vec[6:7, :DIM_MODEL]
        ln2b = vec[7:8, :DIM_MODEL]

        # --- multi-head self attention (no mask, no dropout), all heads at
        # --- once via block-diagonal K / V expansion ------------------------
        qkv = jnp.dot(x, wqkv, preferred_element_type=jnp.float32) + bqkv
        q = qkv[:, 0 * DIM_MODEL:1 * DIM_MODEL].reshape(BATCH, SEQ, DIM_MODEL)
        k = qkv[:, 1 * DIM_MODEL:2 * DIM_MODEL].reshape(BATCH, SEQ, DIM_MODEL)
        v = qkv[:, 2 * DIM_MODEL:3 * DIM_MODEL].reshape(BATCH, SEQ, DIM_MODEL)

        # (B, H*S, D): row h*S+j holds k[:, j, :] restricted to head h's lanes.
        k_blk = jnp.concatenate([k] * NUM_HEAD, axis=1) * head_mask
        v_blk = jnp.concatenate([v] * NUM_HEAD, axis=1) * head_mask

        # scores[b, i, h*S+j] = <q_h[b,i], k_h[b,j]>   (q already 1/sqrt(Hd))
        s = jnp.einsum("bqd,bkd->bqk", q, k_blk,
                       preferred_element_type=jnp.float32)      # (B,S,H*S)
        # subtracting the per-row global max is a valid (constant) shift for
        # every head's softmax group and keeps exp() in range.
        m = jnp.max(s, axis=-1, keepdims=True)
        p = jnp.exp(s - m).reshape(BATCH * SEQ, HS)
        denom = jnp.dot(p, gmat, preferred_element_type=jnp.float32)
        pn = (p / denom).reshape(BATCH, SEQ, HS)                 # per-head softmax
        ctx = jnp.einsum("bqk,bkd->bqd", pn, v_blk,
                         preferred_element_type=jnp.float32)     # (B,S,D), heads
        attn = jnp.dot(ctx.reshape(BATCH * SEQ, DIM_MODEL), wo,  # already in lane
                       preferred_element_type=jnp.float32) + bo  # concat order

        x = _layernorm(x + attn, ln1w, ln1b)

        # --- feed-forward (relu) --------------------------------------------
        h1 = jnp.maximum(
            jnp.dot(x, w1, preferred_element_type=jnp.float32) + b1, 0.0)
        h2 = jnp.dot(h1, w2, preferred_element_type=jnp.float32) + b2

        x = _layernorm(x + h2, ln2w, ln2b)

    # hidden_out = output[0, :, :]  -> rows b*SEQ of the batch-major flat x.
    hidden = jnp.concatenate(
        [x[b * SEQ:b * SEQ + 1, :] for b in range(BATCH)], axis=0)  # (B, D)
    # fused mu / logvar heads: one (D, 2L) matmul; single lane-dense store.
    mulv = jnp.dot(hidden, whead_ref[...],
                   preferred_element_type=jnp.float32) + bhead_ref[...]
    out_ref[...] = jnp.concatenate([hidden, mulv], axis=-1)


# ---------------------------------------------------------------------------
# Full forward (equivalent of VAETransformerEncoder.forward with mask=None).
# Takes the packed parameter dict produced by pack_params().
# ---------------------------------------------------------------------------
@jax.jit
def vae_transformer_encoder(x_sbd, packed):
    x = jnp.transpose(x_sbd, (1, 0, 2))              # (S,B,D) -> (B,S,D)

    vspec = pl.BlockSpec(memory_space=pltpu.MemorySpace.VMEM)
    out = pl.pallas_call(
        fused_encoder_kernel,
        out_shape=jax.ShapeDtypeStruct(
            (BATCH, DIM_MODEL + 2 * DIM_LATENT), jnp.float32),
        in_specs=[vspec] * 8,
        out_specs=vspec,
    )(x, packed["wqkv"], packed["wo"], packed["w1"], packed["w2"],
      packed["vec"], packed["whead"], packed["bhead"])

    hidden = out[:, :DIM_MODEL]
    mu     = out[:, DIM_MODEL:DIM_MODEL + DIM_LATENT]
    logvar = out[:, DIM_MODEL + DIM_LATENT:]
    return hidden, mu, logvar


# ---------------------------------------------------------------------------
# One-time parameter packing: stack per-type weights with a leading layer
# axis, collect every bias / LN vector into one (L, 8, 128) slab, and fold
# the 1/sqrt(head_dim) scale into the q columns of wqkv / bqkv.
# ---------------------------------------------------------------------------
def pack_params(params):
    inv_sqrt_hd = 1.0 / math.sqrt(HEAD_DIM)
    wqkv_all, wo_all, w1_all, w2_all, vec_all = [], [], [], [], []
    for lw in params["layers"]:
        wqkv = lw["wqkv"].at[:, :DIM_MODEL].multiply(inv_sqrt_hd)
        bqkv = lw["bqkv"].at[:, :DIM_MODEL].multiply(inv_sqrt_hd)
        wqkv_all.append(wqkv)
        wo_all.append(lw["wo"])
        w1_all.append(lw["w1"])
        w2_all.append(lw["w2"])
        vec = jnp.zeros((8, 128), jnp.float32)
        vec = vec.at[0, :3 * DIM_MODEL].set(bqkv[0])
        vec = vec.at[1, :DIM_MODEL].set(lw["bo"][0])
        vec = vec.at[2, :DIM_FF].set(lw["b1"][0])
        vec = vec.at[3, :DIM_MODEL].set(lw["b2"][0])
        vec = vec.at[4, :DIM_MODEL].set(lw["ln1w"][0])
        vec = vec.at[5, :DIM_MODEL].set(lw["ln1b"][0])
        vec = vec.at[6, :DIM_MODEL].set(lw["ln2w"][0])
        vec = vec.at[7, :DIM_MODEL].set(lw["ln2b"][0])
        vec_all.append(vec)
    return dict(
        wqkv=jnp.stack(wqkv_all),          # (L, D, 3D)
        wo=jnp.stack(wo_all),              # (L, D, D)
        w1=jnp.stack(w1_all),              # (L, D, FF)
        w2=jnp.stack(w2_all),              # (L, FF, D)
        vec=jnp.stack(vec_all),            # (L, 8, 128)
        whead=params["whead"],             # (D, 2L_latent)
        bhead=params["bhead"],             # (1, 2L_latent)
    )


# ---------------------------------------------------------------------------
# Deterministic parameter init.  nn.Linear stores weight (out, in); we keep
# the pre-transposed (in, out) layout so kernels compute x @ W directly.
# ---------------------------------------------------------------------------
def init_params(key):
    def nxt():
        nonlocal key
        key, sub = jax.random.split(key)
        return sub

    def linear_t(out_f, in_f):
        w = 0.05 * jax.random.normal(nxt(), (out_f, in_f), jnp.float32)
        b = 0.01 * jax.random.normal(nxt(), (1, out_f), jnp.float32)
        return w.T, b                                 # pre-transposed (in, out)

    layers = []
    for _ in range(NUM_LAYERS):
        wqkv, bqkv = linear_t(3 * DIM_MODEL, DIM_MODEL)
        wo,   bo   = linear_t(DIM_MODEL, DIM_MODEL)
        w1,   b1   = linear_t(DIM_FF, DIM_MODEL)
        w2,   b2   = linear_t(DIM_MODEL, DIM_FF)
        layers.append(dict(
            wqkv=wqkv, bqkv=bqkv, wo=wo, bo=bo,
            ln1w=jnp.ones((1, DIM_MODEL), jnp.float32),
            ln1b=jnp.zeros((1, DIM_MODEL), jnp.float32),
            w1=w1, b1=b1, w2=w2, b2=b2,
            ln2w=jnp.ones((1, DIM_MODEL), jnp.float32),
            ln2b=jnp.zeros((1, DIM_MODEL), jnp.float32),
        ))

    wmu, bmu = linear_t(DIM_LATENT, DIM_MODEL)
    wlv, blv = linear_t(DIM_LATENT, DIM_MODEL)
    # fuse the two VAE heads into one (D, 2L) matmul
    whead = jnp.concatenate([wmu, wlv], axis=1)       # (D, 2L)
    bhead = jnp.concatenate([bmu, blv], axis=1)       # (1, 2L)
    return dict(layers=layers, whead=whead, bhead=bhead)


# ---------------------------------------------------------------------------
# Pure-JAX reference (same math, natural un-packed params) for a sanity check.
# ---------------------------------------------------------------------------
def reference_forward(x_sbd, params):
    x = jnp.transpose(x_sbd, (1, 0, 2))               # (B,S,D)
    B, S, D = x.shape
    for lw in params["layers"]:
        qkv = x @ lw["wqkv"] + lw["bqkv"][0]
        q, k, v = jnp.split(qkv, 3, axis=-1)
        q = q.reshape(B, S, NUM_HEAD, HEAD_DIM)
        k = k.reshape(B, S, NUM_HEAD, HEAD_DIM)
        v = v.reshape(B, S, NUM_HEAD, HEAD_DIM)
        s = jnp.einsum("bqhd,bkhd->bhqk", q, k) / math.sqrt(HEAD_DIM)
        p = jax.nn.softmax(s, axis=-1)
        a = jnp.einsum("bhqk,bkhd->bqhd", p, v).reshape(B, S, D)
        a = a @ lw["wo"] + lw["bo"][0]
        x = _layernorm(x + a, lw["ln1w"][0], lw["ln1b"][0])
        h1 = jax.nn.relu(x @ lw["w1"] + lw["b1"][0])
        h2 = h1 @ lw["w2"] + lw["b2"][0]
        x = _layernorm(x + h2, lw["ln2w"][0], lw["ln2b"][0])
    hidden = x[:, 0, :]
    mulv = hidden @ params["whead"] + params["bhead"][0]
    return hidden, mulv[:, :DIM_LATENT], mulv[:, DIM_LATENT:]


if __name__ == "__main__":
    key = jax.random.PRNGKey(0)
    pkey, xkey = jax.random.split(key)
    params = init_params(pkey)
    packed = pack_params(params)

    # PyTorch-convention input: (seq, batch, dim_model)
    x = jax.random.normal(xkey, (SEQ, BATCH, DIM_MODEL), jnp.float32)

    hidden, mu, logvar = vae_transformer_encoder(x, packed)
    jax.block_until_ready((hidden, mu, logvar))

    assert hidden.shape == (BATCH, DIM_MODEL)
    assert mu.shape == (BATCH, DIM_LATENT)
    assert logvar.shape == (BATCH, DIM_LATENT)

    h_ref, mu_ref, lv_ref = reference_forward(x, params)
    max_err = max(float(jnp.max(jnp.abs(hidden - h_ref))),
                  float(jnp.max(jnp.abs(mu - mu_ref))),
                  float(jnp.max(jnp.abs(logvar - lv_ref))))
    # Exact softmax division (no approx reciprocal) -> tight tolerance.
    assert max_err < 5e-4, f"mismatch vs reference: {max_err}"

    print("KERNEL_OK")
</pallas_src>

<mosaic_0001>
module attributes {stable_mosaic.version = 11 : i64} {
  func.func @fused_encoder_kernel(%arg0: memref<2x8x32xf32, #tpu.memory_space<vmem>>, %arg1: memref<2x32x96xf32, #tpu.memory_space<vmem>>, %arg2: memref<2x32x32xf32, #tpu.memory_space<vmem>>, %arg3: memref<2x32x64xf32, #tpu.memory_space<vmem>>, %arg4: memref<2x64x32xf32, #tpu.memory_space<vmem>>, %arg5: memref<2x8x128xf32, #tpu.memory_space<vmem>>, %arg6: memref<32x32xf32, #tpu.memory_space<vmem>>, %arg7: memref<1x32xf32, #tpu.memory_space<vmem>>, %arg8: memref<2x64xf32, #tpu.memory_space<vmem>>) attributes {dimension_semantics = [], scalar_prefetch = 0 : i64, scratch_operands = 0 : i64, tpu.core_type = #tpu.core_type<tc>} {
    %c0 = arith.constant 0 : index
    %c0_0 = arith.constant 0 : index
    %c0_1 = arith.constant 0 : index
    %0 = vector.load %arg0[%c0, %c0_0, %c0_1] : memref<2x8x32xf32, #tpu.memory_space<vmem>>, vector<2x8x32xf32>
    %1 = vector.shape_cast %0 : vector<2x8x32xf32> to vector<16x32xf32>
    %2 = tpu.iota {dimensions = array<i32: 0>} : vector<32x32xi32>
    %c3_i32 = arith.constant 3 : i32
    %3 = vector.broadcast %c3_i32 : i32 to vector<32x32xi32>
    %4 = arith.shrsi %2, %3 : vector<32x32xi32>
    %5 = tpu.iota {dimensions = array<i32: 1>} : vector<32x32xi32>
    %c3_i32_2 = arith.constant 3 : i32
    %6 = vector.broadcast %c3_i32_2 : i32 to vector<32x32xi32>
    %7 = arith.shrsi %5, %6 : vector<32x32xi32>
    %8 = arith.cmpi eq, %4, %7 : vector<32x32xi32>
    %cst = arith.constant 1.000000e+00 : f32
    %cst_3 = arith.constant 0.000000e+00 : f32
    %9 = vector.broadcast %cst : f32 to vector<32x32xf32>
    %10 = vector.broadcast %cst_3 : f32 to vector<32x32xf32>
    %11 = arith.select %8, %9, %10 : vector<32x32xi1>, vector<32x32xf32>
    %12 = tpu.iota {dimensions = array<i32: 0>} : vector<32x32xi32>
    %c3_i32_4 = arith.constant 3 : i32
    %13 = vector.broadcast %c3_i32_4 : i32 to vector<32x32xi32>
    %14 = arith.shrsi %12, %13 : vector<32x32xi32>
    %15 = tpu.iota {dimensions = array<i32: 1>} : vector<32x32xi32>
    %c3_i32_5 = arith.constant 3 : i32
    %16 = vector.broadcast %c3_i32_5 : i32 to vector<32x32xi32>
    %17 = arith.shrsi %15, %16 : vector<32x32xi32>
    %18 = arith.cmpi eq, %14, %17 : vector<32x32xi32>
    %cst_6 = arith.constant 1.000000e+00 : f32
    %cst_7 = arith.constant 0.000000e+00 : f32
    %19 = vector.broadcast %cst_6 : f32 to vector<32x32xf32>
    %20 = vector.broadcast %cst_7 : f32 to vector<32x32xf32>
    %21 = arith.select %18, %19, %20 : vector<32x32xi1>, vector<32x32xf32>
    %c0_8 = arith.constant 0 : index
    %c0_9 = arith.constant 0 : index
    %c0_10 = arith.constant 0 : index
    %22 = vector.load %arg1[%c0_8, %c0_9, %c0_10] : memref<2x32x96xf32, #tpu.memory_space<vmem>>, vector<1x32x96xf32>
    %23 = vector.shape_cast %22 : vector<1x32x96xf32> to vector<32x96xf32>
    %c0_11 = arith.constant 0 : index
    %c0_12 = arith.constant 0 : index
    %c0_13 = arith.constant 0 : index
    %24 = vector.load %arg2[%c0_11, %c0_12, %c0_13] : memref<2x32x32xf32, #tpu.memory_space<vmem>>, vector<1x32x32xf32>
    %25 = vector.shape_cast %24 : vector<1x32x32xf32> to vector<32x32xf32>
    %c0_14 = arith.constant 0 : index
    %c0_15 = arith.constant 0 : index
    %c0_16 = arith.constant 0 : index
    %26 = vector.load %arg3[%c0_14, %c0_15, %c0_16] : memref<2x32x64xf32, #tpu.memory_space<vmem>>, vector<1x32x64xf32>
    %27 = vector.shape_cast %26 : vector<1x32x64xf32> to vector<32x64xf32>
    %c0_17 = arith.constant 0 : index
    %c0_18 = arith.constant 0 : index
    %c0_19 = arith.constant 0 : index
    %28 = vector.load %arg4[%c0_17, %c0_18, %c0_19] : memref<2x64x32xf32, #tpu.memory_space<vmem>>, vector<1x64x32xf32>
    %29 = vector.shape_cast %28 : vector<1x64x32xf32> to vector<64x32xf32>
    %c0_20 = arith.constant 0 : index
    %c0_21 = arith.constant 0 : index
    %c0_22 = arith.constant 0 : index
    %30 = vector.load %arg5[%c0_20, %c0_21, %c0_22] : memref<2x8x128xf32, #tpu.memory_space<vmem>>, vector<1x8x128xf32>
    %31 = vector.shape_cast %30 : vector<1x8x128xf32> to vector<8x128xf32>
    %32 = vector.extract_strided_slice %31 {offsets = [0, 0], sizes = [1, 96], strides = [1, 1]} : vector<8x128xf32> to vector<1x96xf32>
    %33 = vector.extract_strided_slice %31 {offsets = [1, 0], sizes = [1, 32], strides = [1, 1]} : vector<8x128xf32> to vector<1x32xf32>
    %34 = vector.extract_strided_slice %31 {offsets = [2, 0], sizes = [1, 64], strides = [1, 1]} : vector<8x128xf32> to vector<1x64xf32>
    %35 = vector.extract_strided_slice %31 {offsets = [3, 0], sizes = [1, 32], strides = [1, 1]} : vector<8x128xf32> to vector<1x32xf32>
    %36 = vector.extract_strided_slice %31 {offsets = [4, 0], sizes = [1, 32], strides = [1, 1]} : vector<8x128xf32> to vector<1x32xf32>
    %37 = vector.extract_strided_slice %31 {offsets = [5, 0], sizes = [1, 32], strides = [1, 1]} : vector<8x128xf32> to vector<1x32xf32>
    %38 = vector.extract_strided_slice %31 {offsets = [6, 0], sizes = [1, 32], strides = [1, 1]} : vector<8x128xf32> to vector<1x32xf32>
    %39 = vector.extract_strided_slice %31 {offsets = [7, 0], sizes = [1, 32], strides = [1, 1]} : vector<8x128xf32> to vector<1x32xf32>
    %cst_23 = arith.constant dense<0.000000e+00> : vector<16x96xf32>
    %40 = tpu.matmul %1, %23, %cst_23 {dimension_numbers = #tpu.dot_dimension_numbers<[1], [0], [0], [1], [0, 0, 1, 1], [], []>} : vector<16x32xf32>, vector<32x96xf32>, vector<16x96xf32> -> vector<16x96xf32>
    %41 = vector.broadcast %32 : vector<1x96xf32> to vector<16x96xf32>
    %42 = arith.addf %40, %41 : vector<16x96xf32>
    %43 = vector.extract_strided_slice %42 {offsets = [0, 0], sizes = [16, 32], strides = [1, 1]} : vector<16x96xf32> to vector<16x32xf32>
    %44 = vector.shape_cast %43 : vector<16x32xf32> to vector<2x8x32xf32>
    %45 = vector.extract_strided_slice %42 {offsets = [0, 32], sizes = [16, 32], strides = [1, 1]} : vector<16x96xf32> to vector<16x32xf32>
    %46 = vector.shape_cast %45 : vector<16x32xf32> to vector<2x8x32xf32>
    %47 = vector.extract_strided_slice %42 {offsets = [0, 64], sizes = [16, 32], strides = [1, 1]} : vector<16x96xf32> to vector<16x32xf32>
    %48 = vector.shape_cast %47 : vector<16x32xf32> to vector<2x8x32xf32>
    %49 = tpu.concatenate %46, %46, %46, %46 in 1 : vector<2x8x32xf32>, vector<2x8x32xf32>, vector<2x8x32xf32>, vector<2x8x32xf32> -> vector<2x32x32xf32>
    %50 = vector.shape_cast %11 : vector<32x32xf32> to vector<1x32x32xf32>
    %51 = vector.broadcast %50 : vector<1x32x32xf32> to vector<2x32x32xf32>
    %52 = arith.mulf %49, %51 : vector<2x32x32xf32>
    %53 = tpu.concatenate %48, %48, %48, %48 in 1 : vector<2x8x32xf32>, vector<2x8x32xf32>, vector<2x8x32xf32>, vector<2x8x32xf32> -> vector<2x32x32xf32>
    %54 = vector.shape_cast %11 : vector<32x32xf32> to vector<1x32x32xf32>
    %55 = vector.broadcast %54 : vector<1x32x32xf32> to vector<2x32x32xf32>
    %56 = arith.mulf %53, %55 : vector<2x32x32xf32>
    "tpu.trace_start"() <{level = 10 : i32, message = "bqd,bkd->bqk"}> : () -> ()
    %cst_24 = arith.constant dense<0.000000e+00> : vector<2x8x32xf32>
    %57 = tpu.matmul %44, %52, %cst_24 {dimension_numbers = #tpu.dot_dimension_numbers<[2], [2], [1], [1], [0, 0, 0, 1, 1, 1], [0], [0]>} : vector<2x8x32xf32>, vector<2x32x32xf32>, vector<2x8x32xf32> -> vector<2x8x32xf32>
    "tpu.trace_stop"() : () -> ()
    %cst_25 = arith.constant dense<0xFF800000> : vector<2x8xf32>
    %58 = vector.multi_reduction <maximumf>, %57, %cst_25 [2] : vector<2x8x32xf32> to vector<2x8xf32>
    %59 = vector.shape_cast %58 : vector<2x8xf32> to vector<2x8x1xf32>
    %60 = vector.broadcast %59 : vector<2x8x1xf32> to vector<2x8x32xf32>
    %61 = arith.subf %57, %60 : vector<2x8x32xf32>
    %62 = math.exp %61 : vector<2x8x32xf32>
    %63 = vector.shape_cast %62 : vector<2x8x32xf32> to vector<16x32xf32>
    %cst_26 = arith.constant dense<0.000000e+00> : vector<16x32xf32>
    %64 = tpu.matmul %63, %21, %cst_26 {dimension_numbers = #tpu.dot_dimension_numbers<[1], [0], [0], [1], [0, 0, 1, 1], [], []>} : vector<16x32xf32>, vector<32x32xf32>, vector<16x32xf32> -> vector<16x32xf32>
    %65 = arith.divf %63, %64 : vector<16x32xf32>
    %66 = vector.shape_cast %65 : vector<16x32xf32> to vector<2x8x32xf32>
    "tpu.trace_start"() <{level = 10 : i32, message = "bqk,bkd->bqd"}> : () -> ()
    %cst_27 = arith.constant dense<0.000000e+00> : vector<2x8x32xf32>
    %67 = tpu.matmul %66, %56, %cst_27 {dimension_numbers = #tpu.dot_dimension_numbers<[2], [1], [1], [2], [0, 0, 0, 1, 1, 2], [0], [0]>} : vector<2x8x32xf32>, vector<2x32x32xf32>, vector<2x8x32xf32> -> vector<2x8x32xf32>
    "tpu.trace_stop"() : () -> ()
    %68 = vector.shape_cast %67 : vector<2x8x32xf32> to vector<16x32xf32>
    %cst_28 = arith.constant dense<0.000000e+00> : vector<16x32xf32>
    %69 = tpu.matmul %68, %25, %cst_28 {dimension_numbers = #tpu.dot_dimension_numbers<[1], [0], [0], [1], [0, 0, 1, 1], [], []>} : vector<16x32xf32>, vector<32x32xf32>, vector<16x32xf32> -> vector<16x32xf32>
    %70 = vector.broadcast %33 : vector<1x32xf32> to vector<16x32xf32>
    %71 = arith.addf %69, %70 : vector<16x32xf32>
    %72 = arith.addf %1, %71 : vector<16x32xf32>
    %cst_29 = arith.constant dense<0.000000e+00> : vector<16xf32>
    %73 = vector.multi_reduction <add>, %72, %cst_29 [1] : vector<16x32xf32> to vector<16xf32>
    %74 = vector.shape_cast %73 : vector<16xf32> to vector<16x1xf32>
    %cst_30 = arith.constant 3.200000e+01 : f32
    %75 = vector.broadcast %cst_30 : f32 to vector<16x1xf32>
    %76 = arith.divf %74, %75 : vector<16x1xf32>
    %77 = vector.broadcast %76 : vector<16x1xf32> to vector<16x32xf32>
    %78 = arith.subf %72, %77 : vector<16x32xf32>
    %79 = arith.mulf %78, %78 : vector<16x32xf32>
    %cst_31 = arith.constant dense<0.000000e+00> : vector<16xf32>
    %80 = vector.multi_reduction <add>, %79, %cst_31 [1] : vector<16x32xf32> to vector<16xf32>
    %81 = vector.shape_cast %80 : vector<16xf32> to vector<16x1xf32>
    %cst_32 = arith.constant 3.200000e+01 : f32
    %82 = vector.broadcast %cst_32 : f32 to vector<16x1xf32>
    %83 = arith.divf %81, %82 : vector<16x1xf32>
    %84 = vector.broadcast %76 : vector<16x1xf32> to vector<16x32xf32>
    %85 = arith.subf %72, %84 : vector<16x32xf32>
    %cst_33 = arith.constant 9.99999974E-6 : f32
    %86 = vector.broadcast %cst_33 : f32 to vector<16x1xf32>
    %87 = arith.addf %83, %86 : vector<16x1xf32>
    %88 = math.rsqrt %87 : vector<16x1xf32>
    %89 = vector.broadcast %88 : vector<16x1xf32> to vector<16x32xf32>
    %90 = arith.mulf %85, %89 : vector<16x32xf32>
    %91 = vector.broadcast %36 : vector<1x32xf32> to vector<16x32xf32>
    %92 = arith.mulf %90, %91 : vector<16x32xf32>
    %93 = vector.broadcast %37 : vector<1x32xf32> to vector<16x32xf32>
    %94 = arith.addf %92, %93 : vector<16x32xf32>
    %cst_34 = arith.constant dense<0.000000e+00> : vector<16x64xf32>
    %95 = tpu.matmul %94, %27, %cst_34 {dimension_numbers = #tpu.dot_dimension_numbers<[1], [0], [0], [1], [0, 0, 1, 1], [], []>} : vector<16x32xf32>, vector<32x64xf32>, vector<16x64xf32> -> vector<16x64xf32>
    %96 = vector.broadcast %34 : vector<1x64xf32> to vector<16x64xf32>
    %97 = arith.addf %95, %96 : vector<16x64xf32>
    %cst_35 = arith.constant 0.000000e+00 : f32
    %98 = vector.broadcast %cst_35 : f32 to vector<16x64xf32>
    %99 = arith.maximumf %97, %98 : vector<16x64xf32>
    %cst_36 = arith.constant dense<0.000000e+00> : vector<16x32xf32>
    %100 = tpu.matmul %99, %29, %cst_36 {dimension_numbers = #tpu.dot_dimension_numbers<[1], [0], [0], [1], [0, 0, 1, 1], [], []>} : vector<16x64xf32>, vector<64x32xf32>, vector<16x32xf32> -> vector<16x32xf32>
    %101 = vector.broadcast %35 : vector<1x32xf32> to vector<16x32xf32>
    %102 = arith.addf %100, %101 : vector<16x32xf32>
    %103 = arith.addf %94, %102 : vector<16x32xf32>
    %cst_37 = arith.constant dense<0.000000e+00> : vector<16xf32>
    %104 = vector.multi_reduction <add>, %103, %cst_37 [1] : vector<16x32xf32> to vector<16xf32>
    %105 = vector.shape_cast %104 : vector<16xf32> to vector<16x1xf32>
    %cst_38 = arith.constant 3.200000e+01 : f32
    %106 = vector.broadcast %cst_38 : f32 to vector<16x1xf32>
    %107 = arith.divf %105, %106 : vector<16x1xf32>
    %108 = vector.broadcast %107 : vector<16x1xf32> to vector<16x32xf32>
    %109 = arith.subf %103, %108 : vector<16x32xf32>
    %110 = arith.mulf %109, %109 : vector<16x32xf32>
    %cst_39 = arith.constant dense<0.000000e+00> : vector<16xf32>
    %111 = vector.multi_reduction <add>, %110, %cst_39 [1] : vector<16x32xf32> to vector<16xf32>
    %112 = vector.shape_cast %111 : vector<16xf32> to vector<16x1xf32>
    %cst_40 = arith.constant 3.200000e+01 : f32
    %113 = vector.broadcast %cst_40 : f32 to vector<16x1xf32>
    %114 = arith.divf %112, %113 : vector<16x1xf32>
    %115 = vector.broadcast %107 : vector<16x1xf32> to vector<16x32xf32>
    %116 = arith.subf %103, %115 : vector<16x32xf32>
    %cst_41 = arith.constant 9.99999974E-6 : f32
    %117 = vector.broadcast %cst_41 : f32 to vector<16x1xf32>
    %118 = arith.addf %114, %117 : vector<16x1xf32>
    %119 = math.rsqrt %118 : vector<16x1xf32>
    %120 = vector.broadcast %119 : vector<16x1xf32> to vector<16x32xf32>
    %121 = arith.mulf %116, %120 : vector<16x32xf32>
    %122 = vector.broadcast %38 : vector<1x32xf32> to vector<16x32xf32>
    %123 = arith.mulf %121, %122 : vector<16x32xf32>
    %124 = vector.broadcast %39 : vector<1x32xf32> to vector<16x32xf32>
    %125 = arith.addf %123, %124 : vector<16x32xf32>
    %c1 = arith.constant 1 : index
    %c0_42 = arith.constant 0 : index
    %c0_43 = arith.constant 0 : index
    %126 = vector.load %arg1[%c1, %c0_42, %c0_43] : memref<2x32x96xf32, #tpu.memory_space<vmem>>, vector<1x32x96xf32>
    %127 = vector.shape_cast %126 : vector<1x32x96xf32> to vector<32x96xf32>
    %c1_44 = arith.constant 1 : index
    %c0_45 = arith.constant 0 : index
    %c0_46 = arith.constant 0 : index
    %128 = vector.load %arg2[%c1_44, %c0_45, %c0_46] : memref<2x32x32xf32, #tpu.memory_space<vmem>>, vector<1x32x32xf32>
    %129 = vector.shape_cast %128 : vector<1x32x32xf32> to vector<32x32xf32>
    %c1_47 = arith.constant 1 : index
    %c0_48 = arith.constant 0 : index
    %c0_49 = arith.constant 0 : index
    %130 = vector.load %arg3[%c1_47, %c0_48, %c0_49] : memref<2x32x64xf32, #tpu.memory_space<vmem>>, vector<1x32x64xf32>
    %131 = vector.shape_cast %130 : vector<1x32x64xf32> to vector<32x64xf32>
    %c1_50 = arith.constant 1 : index
    %c0_51 = arith.constant 0 : index
    %c0_52 = arith.constant 0 : index
    %132 = vector.load %arg4[%c1_50, %c0_51, %c0_52] : memref<2x64x32xf32, #tpu.memory_space<vmem>>, vector<1x64x32xf32>
    %133 = vector.shape_cast %132 : vector<1x64x32xf32> to vector<64x32xf32>
    %c1_53 = arith.constant 1 : index
    %c0_54 = arith.constant 0 : index
    %c0_55 = arith.constant 0 : index
    %134 = vector.load %arg5[%c1_53, %c0_54, %c0_55] : memref<2x8x128xf32, #tpu.memory_space<vmem>>, vector<1x8x128xf32>
    %135 = vector.shape_cast %134 : vector<1x8x128xf32> to vector<8x128xf32>
    %136 = vector.extract_strided_slice %135 {offsets = [0, 0], sizes = [1, 96], strides = [1, 1]} : vector<8x128xf32> to vector<1x96xf32>
    %137 = vector.extract_strided_slice %135 {offsets = [1, 0], sizes = [1, 32], strides = [1, 1]} : vector<8x128xf32> to vector<1x32xf32>
    %138 = vector.extract_strided_slice %135 {offsets = [2, 0], sizes = [1, 64], strides = [1, 1]} : vector<8x128xf32> to vector<1x64xf32>
    %139 = vector.extract_strided_slice %135 {offsets = [3, 0], sizes = [1, 32], strides = [1, 1]} : vector<8x128xf32> to vector<1x32xf32>
    %140 = vector.extract_strided_slice %135 {offsets = [4, 0], sizes = [1, 32], strides = [1, 1]} : vector<8x128xf32> to vector<1x32xf32>
    %141 = vector.extract_strided_slice %135 {offsets = [5, 0], sizes = [1, 32], strides = [1, 1]} : vector<8x128xf32> to vector<1x32xf32>
    %142 = vector.extract_strided_slice %135 {offsets = [6, 0], sizes = [1, 32], strides = [1, 1]} : vector<8x128xf32> to vector<1x32xf32>
    %143 = vector.extract_strided_slice %135 {offsets = [7, 0], sizes = [1, 32], strides = [1, 1]} : vector<8x128xf32> to vector<1x32xf32>
    %cst_56 = arith.constant dense<0.000000e+00> : vector<16x96xf32>
    %144 = tpu.matmul %125, %127, %cst_56 {dimension_numbers = #tpu.dot_dimension_numbers<[1], [0], [0], [1], [0, 0, 1, 1], [], []>} : vector<16x32xf32>, vector<32x96xf32>, vector<16x96xf32> -> vector<16x96xf32>
    %145 = vector.broadcast %136 : vector<1x96xf32> to vector<16x96xf32>
    %146 = arith.addf %144, %145 : vector<16x96xf32>
    %147 = vector.extract_strided_slice %146 {offsets = [0, 0], sizes = [16, 32], strides = [1, 1]} : vector<16x96xf32> to vector<16x32xf32>
    %148 = vector.shape_cast %147 : vector<16x32xf32> to vector<2x8x32xf32>
    %149 = vector.extract_strided_slice %146 {offsets = [0, 32], sizes = [16, 32], strides = [1, 1]} : vector<16x96xf32> to vector<16x32xf32>
    %150 = vector.shape_cast %149 : vector<16x32xf32> to vector<2x8x32xf32>
    %151 = vector.extract_strided_slice %146 {offsets = [0, 64], sizes = [16, 32], strides = [1, 1]} : vector<16x96xf32> to vector<16x32xf32>
    %152 = vector.shape_cast %151 : vector<16x32xf32> to vector<2x8x32xf32>
    %153 = tpu.concatenate %150, %150, %150, %150 in 1 : vector<2x8x32xf32>, vector<2x8x32xf32>, vector<2x8x32xf32>, vector<2x8x32xf32> -> vector<2x32x32xf32>
    %154 = vector.shape_cast %11 : vector<32x32xf32> to vector<1x32x32xf32>
    %155 = vector.broadcast %154 : vector<1x32x32xf32> to vector<2x32x32xf32>
    %156 = arith.mulf %153, %155 : vector<2x32x32xf32>
    %157 = tpu.concatenate %152, %152, %152, %152 in 1 : vector<2x8x32xf32>, vector<2x8x32xf32>, vector<2x8x32xf32>, vector<2x8x32xf32> -> vector<2x32x32xf32>
    %158 = vector.shape_cast %11 : vector<32x32xf32> to vector<1x32x32xf32>
    %159 = vector.broadcast %158 : vector<1x32x32xf32> to vector<2x32x32xf32>
    %160 = arith.mulf %157, %159 : vector<2x32x32xf32>
    "tpu.trace_start"() <{level = 10 : i32, message = "bqd,bkd->bqk"}> : () -> ()
    %cst_57 = arith.constant dense<0.000000e+00> : vector<2x8x32xf32>
    %161 = tpu.matmul %148, %156, %cst_57 {dimension_numbers = #tpu.dot_dimension_numbers<[2], [2], [1], [1], [0, 0, 0, 1, 1, 1], [0], [0]>} : vector<2x8x32xf32>, vector<2x32x32xf32>, vector<2x8x32xf32> -> vector<2x8x32xf32>
    "tpu.trace_stop"() : () -> ()
    %cst_58 = arith.constant dense<0xFF800000> : vector<2x8xf32>
    %162 = vector.multi_reduction <maximumf>, %161, %cst_58 [2] : vector<2x8x32xf32> to vector<2x8xf32>
    %163 = vector.shape_cast %162 : vector<2x8xf32> to vector<2x8x1xf32>
    %164 = vector.broadcast %163 : vector<2x8x1xf32> to vector<2x8x32xf32>
    %165 = arith.subf %161, %164 : vector<2x8x32xf32>
    %166 = math.exp %165 : vector<2x8x32xf32>
    %167 = vector.shape_cast %166 : vector<2x8x32xf32> to vector<16x32xf32>
    %cst_59 = arith.constant dense<0.000000e+00> : vector<16x32xf32>
    %168 = tpu.matmul %167, %21, %cst_59 {dimension_numbers = #tpu.dot_dimension_numbers<[1], [0], [0], [1], [0, 0, 1, 1], [], []>} : vector<16x32xf32>, vector<32x32xf32>, vector<16x32xf32> -> vector<16x32xf32>
    %169 = arith.divf %167, %168 : vector<16x32xf32>
    %170 = vector.shape_cast %169 : vector<16x32xf32> to vector<2x8x32xf32>
    "tpu.trace_start"() <{level = 10 : i32, message = "bqk,bkd->bqd"}> : () -> ()
    %cst_60 = arith.constant dense<0.000000e+00> : vector<2x8x32xf32>
    %171 = tpu.matmul %170, %160, %cst_60 {dimension_numbers = #tpu.dot_dimension_numbers<[2], [1], [1], [2], [0, 0, 0, 1, 1, 2], [0], [0]>} : vector<2x8x32xf32>, vector<2x32x32xf32>, vector<2x8x32xf32> -> vector<2x8x32xf32>
    "tpu.trace_stop"() : () -> ()
    %172 = vector.shape_cast %171 : vector<2x8x32xf32> to vector<16x32xf32>
    %cst_61 = arith.constant dense<0.000000e+00> : vector<16x32xf32>
    %173 = tpu.matmul %172, %129, %cst_61 {dimension_numbers = #tpu.dot_dimension_numbers<[1], [0], [0], [1], [0, 0, 1, 1], [], []>} : vector<16x32xf32>, vector<32x32xf32>, vector<16x32xf32> -> vector<16x32xf32>
    %174 = vector.broadcast %137 : vector<1x32xf32> to vector<16x32xf32>
    %175 = arith.addf %173, %174 : vector<16x32xf32>
    %176 = arith.addf %125, %175 : vector<16x32xf32>
    %cst_62 = arith.constant dense<0.000000e+00> : vector<16xf32>
    %177 = vector.multi_reduction <add>, %176, %cst_62 [1] : vector<16x32xf32> to vector<16xf32>
    %178 = vector.shape_cast %177 : vector<16xf32> to vector<16x1xf32>
    %cst_63 = arith.constant 3.200000e+01 : f32
    %179 = vector.broadcast %cst_63 : f32 to vector<16x1xf32>
    %180 = arith.divf %178, %179 : vector<16x1xf32>
    %181 = vector.broadcast %180 : vector<16x1xf32> to vector<16x32xf32>
    %182 = arith.subf %176, %181 : vector<16x32xf32>
    %183 = arith.mulf %182, %182 : vector<16x32xf32>
    %cst_64 = arith.constant dense<0.000000e+00> : vector<16xf32>
    %184 = vector.multi_reduction <add>, %183, %cst_64 [1] : vector<16x32xf32> to vector<16xf32>
    %185 = vector.shape_cast %184 : vector<16xf32> to vector<16x1xf32>
    %cst_65 = arith.constant 3.200000e+01 : f32
    %186 = vector.broadcast %cst_65 : f32 to vector<16x1xf32>
    %187 = arith.divf %185, %186 : vector<16x1xf32>
    %188 = vector.broadcast %180 : vector<16x1xf32> to vector<16x32xf32>
    %189 = arith.subf %176, %188 : vector<16x32xf32>
    %cst_66 = arith.constant 9.99999974E-6 : f32
    %190 = vector.broadcast %cst_66 : f32 to vector<16x1xf32>
    %191 = arith.addf %187, %190 : vector<16x1xf32>
    %192 = math.rsqrt %191 : vector<16x1xf32>
    %193 = vector.broadcast %192 : vector<16x1xf32> to vector<16x32xf32>
    %194 = arith.mulf %189, %193 : vector<16x32xf32>
    %195 = vector.broadcast %140 : vector<1x32xf32> to vector<16x32xf32>
    %196 = arith.mulf %194, %195 : vector<16x32xf32>
    %197 = vector.broadcast %141 : vector<1x32xf32> to vector<16x32xf32>
    %198 = arith.addf %196, %197 : vector<16x32xf32>
    %cst_67 = arith.constant dense<0.000000e+00> : vector<16x64xf32>
    %199 = tpu.matmul %198, %131, %cst_67 {dimension_numbers = #tpu.dot_dimension_numbers<[1], [0], [0], [1], [0, 0, 1, 1], [], []>} : vector<16x32xf32>, vector<32x64xf32>, vector<16x64xf32> -> vector<16x64xf32>
    %200 = vector.broadcast %138 : vector<1x64xf32> to vector<16x64xf32>
    %201 = arith.addf %199, %200 : vector<16x64xf32>
    %cst_68 = arith.constant 0.000000e+00 : f32
    %202 = vector.broadcast %cst_68 : f32 to vector<16x64xf32>
    %203 = arith.maximumf %201, %202 : vector<16x64xf32>
    %cst_69 = arith.constant dense<0.000000e+00> : vector<16x32xf32>
    %204 = tpu.matmul %203, %133, %cst_69 {dimension_numbers = #tpu.dot_dimension_numbers<[1], [0], [0], [1], [0, 0, 1, 1], [], []>} : vector<16x64xf32>, vector<64x32xf32>, vector<16x32xf32> -> vector<16x32xf32>
    %205 = vector.broadcast %139 : vector<1x32xf32> to vector<16x32xf32>
    %206 = arith.addf %204, %205 : vector<16x32xf32>
    %207 = arith.addf %198, %206 : vector<16x32xf32>
    %cst_70 = arith.constant dense<0.000000e+00> : vector<16xf32>
    %208 = vector.multi_reduction <add>, %207, %cst_70 [1] : vector<16x32xf32> to vector<16xf32>
    %209 = vector.shape_cast %208 : vector<16xf32> to vector<16x1xf32>
    %cst_71 = arith.constant 3.200000e+01 : f32
    %210 = vector.broadcast %cst_71 : f32 to vector<16x1xf32>
    %211 = arith.divf %209, %210 : vector<16x1xf32>
    %212 = vector.broadcast %211 : vector<16x1xf32> to vector<16x32xf32>
    %213 = arith.subf %207, %212 : vector<16x32xf32>
    %214 = arith.mulf %213, %213 : vector<16x32xf32>
    %cst_72 = arith.constant dense<0.000000e+00> : vector<16xf32>
    %215 = vector.multi_reduction <add>, %214, %cst_72 [1] : vector<16x32xf32> to vector<16xf32>
    %216 = vector.shape_cast %215 : vector<16xf32> to vector<16x1xf32>
    %cst_73 = arith.constant 3.200000e+01 : f32
    %217 = vector.broadcast %cst_73 : f32 to vector<16x1xf32>
    %218 = arith.divf %216, %217 : vector<16x1xf32>
    %219 = vector.broadcast %211 : vector<16x1xf32> to vector<16x32xf32>
    %220 = arith.subf %207, %219 : vector<16x32xf32>
    %cst_74 = arith.constant 9.99999974E-6 : f32
    %221 = vector.broadcast %cst_74 : f32 to vector<16x1xf32>
    %222 = arith.addf %218, %221 : vector<16x1xf32>
    %223 = math.rsqrt %222 : vector<16x1xf32>
    %224 = vector.broadcast %223 : vector<16x1xf32> to vector<16x32xf32>
    %225 = arith.mulf %220, %224 : vector<16x32xf32>
    %226 = vector.broadcast %142 : vector<1x32xf32> to vector<16x32xf32>
    %227 = arith.mulf %225, %226 : vector<16x32xf32>
    %228 = vector.broadcast %143 : vector<1x32xf32> to vector<16x32xf32>
    %229 = arith.addf %227, %228 : vector<16x32xf32>
    %230 = vector.extract_strided_slice %229 {offsets = [0, 0], sizes = [1, 32], strides = [1, 1]} : vector<16x32xf32> to vector<1x32xf32>
    %231 = vector.extract_strided_slice %229 {offsets = [8, 0], sizes = [1, 32], strides = [1, 1]} : vector<16x32xf32> to vector<1x32xf32>
    %232 = tpu.concatenate %230, %231 in 0 : vector<1x32xf32>, vector<1x32xf32> -> vector<2x32xf32>
    %c0_75 = arith.constant 0 : index
    %c0_76 = arith.constant 0 : index
    %233 = vector.load %arg6[%c0_75, %c0_76] : memref<32x32xf32, #tpu.memory_space<vmem>>, vector<32x32xf32>
    %cst_77 = arith.constant dense<0.000000e+00> : vector<2x32xf32>
    %234 = tpu.matmul %232, %233, %cst_77 {dimension_numbers = #tpu.dot_dimension_numbers<[1], [0], [0], [1], [0, 0, 1, 1], [], []>} : vector<2x32xf32>, vector<32x32xf32>, vector<2x32xf32> -> vector<2x32xf32>
    %c0_78 = arith.constant 0 : index
    %c0_79 = arith.constant 0 : index
    %235 = vector.load %arg7[%c0_78, %c0_79] : memref<1x32xf32, #tpu.memory_space<vmem>>, vector<1x32xf32>
    %236 = vector.broadcast %235 : vector<1x32xf32> to vector<2x32xf32>
    %237 = arith.addf %234, %236 : vector<2x32xf32>
    %238 = tpu.concatenate %232, %237 in 1 : vector<2x32xf32>, vector<2x32xf32> -> vector<2x64xf32>
    %c0_80 = arith.constant 0 : index
    %c0_81 = arith.constant 0 : index
    %239 = vector.load %arg8[%c0_80, %c0_81] : memref<2x64xf32, #tpu.memory_space<vmem>>, vector<2x64xf32>
    tpu.vector_store %arg8[%c0_80, %c0_81], %238 {strides = array<i32>} : memref<2x64xf32, #tpu.memory_space<vmem>>, vector<2x64xf32>,
    return
  }
}

</mosaic_0001>

<llo_original>
// kernel: vae_transformer_encoder.1
$region0: #{vae_transformer_encoder.1}
  #allocation0 [shape = 'u32[]', space=smem, size = 0x4, offset = 0x4, fixed_abs, tag = 'smem constant byte address 0x4 - core index']
  #allocation1 [shape = 'u32[144,128]{1,0:T(1,128)}', space=vmem, size = 0x12000, scoped, tag = 'internal scratch']
  %s0 = inlined_call_operand.vmem [shape: f32[2,8,32], index: 0, kind: input, shape index: {}]
  %s1 = inlined_call_operand.vmem [shape: f32[2,32,96], index: 1, kind: input, shape index: {}]
  %s2 = inlined_call_operand.vmem [shape: f32[2,32,32], index: 2, kind: input, shape index: {}]
  %s3 = inlined_call_operand.vmem [shape: f32[2,32,64], index: 3, kind: input, shape index: {}]
  %s4 = inlined_call_operand.vmem [shape: f32[2,64,32], index: 4, kind: input, shape index: {}]
  %s5 = inlined_call_operand.hbm [shape: f32[2,8,128], index: 5, kind: input, shape index: {}]
  %s6 = inlined_call_operand.vmem [shape: f32[32,32], index: 6, kind: input, shape index: {}]
  %s7 = inlined_call_operand.hbm [shape: f32[1,32], index: 7, kind: input, shape index: {}]
  %s8 = inlined_call_operand.vmem [shape: f32[2,64], index: 8, kind: output, shape index: {}]
  %s9 = sld [smem:[#allocation0]]
  $region50: #{vae_transformer_encoder.1} parent=0
    _
  %s11 = ssub.s32 1, %s9
  %s12 = scalar_select 0, %s11, %s9
  $region1: #{vae_transformer_encoder.1} parent=0
    #allocation2 [shape = 'u8[8192]{0}', space=vmem, size = 0x2000, scoped, tag = 'input window, operand 5, single buffered']
    #allocation3 [shape = 's32[1]{0}', space=sflag, size = 0x4, scoped, tag = 'scoped memory for vae_transformer_encoder.1']
    #allocation4 [shape = 'u8[512]{0}', space=vmem, size = 0x400, scoped, tag = 'input window, operand 7, single buffered']
    #allocation5 [shape = 's32[1]{0}', space=sflag, size = 0x4, scoped, tag = 'scoped memory for vae_transformer_encoder.1']
    %13 = vsyncpa [#allocation3], 0
    %14 = vsyncpa [#allocation5], 0
    // Predicated region
    $region2: #{vae_transformer_encoder.1} parent=1 // pred_check
      _
    $region3: #{vae_transformer_encoder.1} parent=1 // pred_check_branch
      %16 = sbr.rel (0) target = $region5
    $region4: #{vae_transformer_encoder.1} parent=1 // pred_region
      _
    $region5: #{vae_transformer_encoder.1} parent=1 // pred_fallthru
      _
    // Predicated region
    $region6: #{vae_transformer_encoder.1} parent=1 // pred_check
      _
    $region7: #{vae_transformer_encoder.1} parent=1 // pred_check_branch
      %18 = sbr.rel (0) target = $region9
    $region8: #{vae_transformer_encoder.1} parent=1 // pred_region
      _
    $region9: #{vae_transformer_encoder.1} parent=1 // pred_fallthru
      _
    // Predicated region
    $region10: #{vae_transformer_encoder.1} parent=1 // pred_check
      _
    $region11: #{vae_transformer_encoder.1} parent=1 // pred_check_branch
      %20 = sbr.rel (0) target = $region13
    $region12: #{vae_transformer_encoder.1} parent=1 // pred_region
      _
    $region13: #{vae_transformer_encoder.1} parent=1 // pred_fallthru
      _
    // Predicated region
    $region14: #{vae_transformer_encoder.1} parent=1 // pred_check
      _
    $region15: #{vae_transformer_encoder.1} parent=1 // pred_check_branch
      %22 = sbr.rel (0) target = $region17
    $region16: #{vae_transformer_encoder.1} parent=1 // pred_region
      _
    $region17: #{vae_transformer_encoder.1} parent=1 // pred_fallthru
      _
    // Predicated region
    $region18: #{vae_transformer_encoder.1} parent=1 // pred_check
      _
    $region19: #{vae_transformer_encoder.1} parent=1 // pred_check_branch
      %24 = sbr.rel (0) target = $region21
    $region20: #{vae_transformer_encoder.1} parent=1 // pred_region
      _
    $region21: #{vae_transformer_encoder.1} parent=1 // pred_fallthru
      _
    // Predicated region
    $region22: #{vae_transformer_encoder.1} parent=1 // pred_check
      _
    $region23: #{vae_transformer_encoder.1} parent=1 // pred_check_branch
      %26 = sbr.rel (0) target = $region25
    $region24: #{vae_transformer_encoder.1} parent=1 // pred_region
      %s28 = ssub.s32 256, 256
      %29 = vsyncadd [#allocation3], %s28
      %s30 = sshll.u32 [#allocation2], 4
      %s31 = int_to_ptr.vmem [resolvable:$true] %s30
      %36 = dma.hbm_to_vmem [thread:$0]  %s5, 256, %s31, [#allocation3], 128, 128, 8
    $region25: #{vae_transformer_encoder.1} parent=1 // pred_fallthru
      _
    // Predicated region
    $region26: #{vae_transformer_encoder.1} parent=1 // pred_check
      _
    $region27: #{vae_transformer_encoder.1} parent=1 // pred_check_branch
      %38 = sbr.rel (0) target = $region29
    $region28: #{vae_transformer_encoder.1} parent=1 // pred_region
      _
    $region29: #{vae_transformer_encoder.1} parent=1 // pred_fallthru
      _
    // Predicated region
    $region30: #{vae_transformer_encoder.1} parent=1 // pred_check
      _
    $region31: #{vae_transformer_encoder.1} parent=1 // pred_check_branch
      %40 = sbr.rel (0) target = $region33
    $region32: #{vae_transformer_encoder.1} parent=1 // pred_region
      %s42 = ssub.s32 16, 16
      %43 = vsyncadd [#allocation5], %s42
      %s45 = sshll.u32 [#allocation4], 4
      %s46 = int_to_ptr.vmem [resolvable:$true] %s45
      %48 = dma.hbm_to_vmem [thread:$0]  %s7, 16, %s46, [#allocation5]
    $region33: #{vae_transformer_encoder.1} parent=1 // pred_fallthru
      _
    // Predicated region
    $region34: #{vae_transformer_encoder.1} parent=1 // pred_check
      _
    $region35: #{vae_transformer_encoder.1} parent=1 // pred_check_branch
      %50 = sbr.rel (0) target = $region37
    $region36: #{vae_transformer_encoder.1} parent=1 // pred_region
      %51 = dma.done [#allocation3], 256
    $region37: #{vae_transformer_encoder.1} parent=1 // pred_fallthru
      _
    // Predicated region
    $region38: #{vae_transformer_encoder.1} parent=1 // pred_check
      _
    $region39: #{vae_transformer_encoder.1} parent=1 // pred_check_branch
      %53 = sbr.rel (0) target = $region41
    $region40: #{vae_transformer_encoder.1} parent=1 // pred_region
      %54 = dma.done [#allocation5], 16
    $region41: #{vae_transformer_encoder.1} parent=1 // pred_fallthru
      _
    %v55 = vld [vmem:[%s0] sm:$0xff]
    %v56 = vld [vmem:[%s0 + $0x8] sm:$0xff]
    %v57 = vlaneseq
    %v58 = vshrl.u32 %v57, 7
    %v59 = vadd.s32 %v58, 8
    %v60 = vadd.s32 %v58, 16
    %v61 = vadd.s32 %v58, 24
    %v62 = vshra.s32 %v58, 3
    %v63 = vshra.s32 %v59, 3
    %v64 = vshra.s32 %v60, 3
    %v65 = vshra.s32 %v61, 3
    %v66 = vlaneseq
    %v67 = vand.u32 %v66, 127
    %v68 = vshra.s32 %v67, 3
    %vm69 = vcmp.eq.s32.totalorder %v62, %v68
    %vm70 = vcmp.eq.s32.totalorder %v63, %v68
    %vm71 = vcmp.eq.s32.totalorder %v64, %v68
    %vm72 = vcmp.eq.s32.totalorder %v65, %v68
    %v73 = vsel %vm69, 1.0, 0.0
    %v74 = vsel %vm70, 1.0, 0.0
    %v75 = vsel %vm71, 1.0, 0.0
    %v76 = vsel %vm72, 1.0, 0.0
    %v77 = vld [vmem:[%s1] sm:$0xff]
    %v78 = vld [vmem:[%s1 + $0x8] sm:$0xff]
    %v79 = vld [vmem:[%s1 + $0x10] sm:$0xff]
    %v80 = vld [vmem:[%s1 + $0x18] sm:$0xff]
    %v81 = vld [vmem:[%s2] sm:$0xff]
    %v82 = vld [vmem:[%s2 + $0x8] sm:$0xff]
    %v83 = vld [vmem:[%s2 + $0x10] sm:$0xff]
    %v84 = vld [vmem:[%s2 + $0x18] sm:$0xff]
    %v85 = vld [vmem:[%s3] sm:$0xff]
    %v86 = vld [vmem:[%s3 + $0x8] sm:$0xff]
    %v87 = vld [vmem:[%s3 + $0x10] sm:$0xff]
    %v88 = vld [vmem:[%s3 + $0x18] sm:$0xff]
    %v89 = vld [vmem:[%s4] sm:$0xff]
    %v90 = vld [vmem:[%s4 + $0x8] sm:$0xff]
    %v91 = vld [vmem:[%s4 + $0x10] sm:$0xff]
    %v92 = vld [vmem:[%s4 + $0x18] sm:$0xff]
    %v93 = vld [vmem:[%s4 + $0x20] sm:$0xff]
    %v94 = vld [vmem:[%s4 + $0x28] sm:$0xff]
    %v95 = vld [vmem:[%s4 + $0x30] sm:$0xff]
    %v96 = vld [vmem:[%s4 + $0x38] sm:$0xff]
    %v97 = vld [vmem:[#allocation2] sm:$0xff]
    %v98 = vlaneseq
    %v99 = vshrl.u32 %v98, 7
    %v100 = vsub.s32 0, %v99
    %v101 = vrot.slane %v97, %v100
    %vm102 = vcmask 261120
    %v104 = vsel %vm102, %v55, 0
    %v107 = vsel %vm102, %v56, 0
    %109 = vmatprep.subr.mxu0 0.0
    %110 = vmatpush1.msra.mxu0 0.0
    %111 = vmatprep.subr.mxu0 0.0
    %112 = vmatpush1.msra.mxu0 0.0
    %113 = vmatprep.subr.mxu0 0.0
    %114 = vmatpush1.msra.mxu0 0.0
    %115 = vmatprep.subr.mxu0 0.0
    %116 = vmatpush1.msra.mxu0 0.0
    %117 = vmatprep.subr.mxu0 0.0
    %118 = vmatpush1.msra.mxu0 0.0
    %119 = vmatprep.subr.mxu0 0.0
    %120 = vmatpush1.msra.mxu0 0.0
    %121 = vmatprep.subr.mxu0 0.0
    %122 = vmatpush1.msra.mxu0 0.0
    %123 = vmatprep.subr.mxu0 0.0
    %124 = vmatpush1.msra.mxu0 0.0
    %125 = vmatprep.subr.mxu0 0.0
    %126 = vmatpush1.msra.mxu0 0.0
    %127 = vmatprep.subr.mxu0 0.0
    %128 = vmatpush1.msra.mxu0 0.0
    %129 = vmatprep.subr.mxu0 0.0
    %130 = vmatpush1.msra.mxu0 0.0
    %131 = vmatprep.subr.mxu0 0.0
    %132 = vmatpush1.msra.mxu0 0.0
    %133 = vmatprep.subr.mxu0 0.0
    %134 = vmatpush1.msra.mxu0 %v80
    %135 = vmatprep.subr.mxu0 0.0
    %136 = vmatpush1.msra.mxu0 %v79
    %137 = vmatprep.subr.mxu0 0.0
    %138 = vmatpush1.msra.mxu0 %v78
    %139 = vmatprep.subr.mxu0 0.0
    %140 = vmatpush1.msra.mxu0 %v77
    %141 = vmatprep.subr.mxu0 0.0
    %142 = vmatpush2.msra.mxu0 0.0
    %143 = vmatprep.subr.mxu0 0.0
    %144 = vmatpush2.msra.mxu0 0.0
    %145 = vmatprep.subr.mxu0 0.0
    %146 = vmatpush2.msra.mxu0 0.0
    %147 = vmatprep.subr.mxu0 0.0
    %148 = vmatpush2.msra.mxu0 0.0
    %149 = vmatprep.subr.mxu0 0.0
    %150 = vmatpush2.msra.mxu0 0.0
    %151 = vmatprep.subr.mxu0 0.0
    %152 = vmatpush2.msra.mxu0 0.0
    %153 = vmatprep.subr.mxu0 0.0
    %154 = vmatpush2.msra.mxu0 0.0
    %155 = vmatprep.subr.mxu0 0.0
    %156 = vmatpush2.msra.mxu0 0.0
    %157 = vmatprep.subr.mxu0 0.0
    %158 = vmatpush2.msra.mxu0 0.0
    %159 = vmatprep.subr.mxu0 0.0
    %160 = vmatpush2.msra.mxu0 0.0
    %161 = vmatprep.subr.mxu0 0.0
    %162 = vmatpush2.msra.mxu0 0.0
    %163 = vmatprep.subr.mxu0 0.0
    %164 = vmatpush2.msra.mxu0 0.0
    %165 = vmatprep.subr.mxu0 0.0
    %166 = vmatpush2.msra.mxu0 0.0
    %167 = vmatprep.subr.mxu0 0.0
    %168 = vmatpush2.msra.mxu0 0.0
    %169 = vmatprep.subr.mxu0 0.0
    %170 = vmatpush2.msra.mxu0 0.0
    %171 = vmatprep.subr.mxu0 0.0
    %172 = vmatpush2.msra.mxu0 0.0
    %173 = vmatprep.mubr.f32.mxu0 0.0
    %174 = vmatmul.mubr.f32.gmra.mxu0 %v104
    %v175 = vpop.f32.mrf.mxu0
    %v176 = vadd.f32 %v101, %v175
    %v177 = vpop.f32.mrf.mxu0
    %178 = vmatprep.mubr.f32.mxu0 0.0
    %179 = vmatmul.mubr.f32.gmra.mxu0 %v107
    %v180 = vpop.f32.mrf.mxu0
    %v181 = vadd.f32 %v101, %v180
    %v182 = vpop.f32.mrf.mxu0
    %183 = vdwg.mxu0
    %188 = vrot.lane.b32.xlu0 %v73, 32
    %v189 = vpop.permute.xlu0 %188
    %190 = vrot.lane.b32.xlu0 %v74, 32
    %v191 = vpop.permute.xlu0 %190
    %192 = vrot.lane.b32.xlu0 %v75, 32
    %v193 = vpop.permute.xlu0 %192
    %194 = vrot.lane.b32.xlu0 %v76, 32
    %v195 = vpop.permute.xlu0 %194
    %v200 = vmul.f32 %v176, %v189
    %v201 = vmul.f32 %v176, %v191
    %v202 = vmul.f32 %v176, %v193
    %v203 = vmul.f32 %v176, %v195
    %v204 = vmul.f32 %v181, %v189
    %v205 = vmul.f32 %v181, %v191
    %v206 = vmul.f32 %v181, %v193
    %v207 = vmul.f32 %v181, %v195
    %208 = vrot.lane.b32.xlu0 %v73, 64
    %v209 = vpop.permute.xlu0 %208
    %210 = vrot.lane.b32.xlu0 %v74, 64
    %v211 = vpop.permute.xlu0 %210
    %212 = vrot.lane.b32.xlu0 %v75, 64
    %v213 = vpop.permute.xlu0 %212
    %214 = vrot.lane.b32.xlu0 %v76, 64
    %v215 = vpop.permute.xlu0 %214
    %v220 = vmul.f32 %v176, %v209
    %v221 = vmul.f32 %v176, %v211
    %v222 = vmul.f32 %v176, %v213
    %v223 = vmul.f32 %v176, %v215
    %v224 = vmul.f32 %v181, %v209
    %v225 = vmul.f32 %v181, %v211
    %v226 = vmul.f32 %v181, %v213
    %v227 = vmul.f32 %v181, %v215
    %232 = vrot.lane.b32.xlu0 %v200, 96
    %v233 = vpop.permute.xlu0 %232
    %234 = vrot.lane.b32.xlu0 %v201, 96
    %v235 = vpop.permute.xlu0 %234
    %236 = vrot.lane.b32.xlu0 %v202, 96
    %v237 = vpop.permute.xlu0 %236
    %238 = vrot.lane.b32.xlu0 %v203, 96
    %v239 = vpop.permute.xlu0 %238
    %v241 = vsel %vm102, %v176, 0
    %v243 = vsel %vm102, %v233, 0
    %v245 = vsel %vm102, %v235, 0
    %v247 = vsel %vm102, %v237, 0
    %v249 = vsel %vm102, %v239, 0
    %251 = vmatprep.subr.mxu0 0.0
    %252 = vmatpush1.xpose.msra.mxu0 0.0
    %253 = vmatprep.subr.mxu0 0.0
    %254 = vmatpush1.xpose.msra.mxu0 0.0
    %255 = vmatprep.subr.mxu0 0.0
    %256 = vmatpush1.xpose.msra.mxu0 0.0
    %257 = vmatprep.subr.mxu0 0.0
    %258 = vmatpush1.xpose.msra.mxu0 0.0
    %259 = vmatprep.subr.mxu0 0.0
    %260 = vmatpush1.xpose.msra.mxu0 0.0
    %261 = vmatprep.subr.mxu0 0.0
    %262 = vmatpush1.xpose.msra.mxu0 0.0
    %263 = vmatprep.subr.mxu0 0.0
    %264 = vmatpush1.xpose.msra.mxu0 0.0
    %265 = vmatprep.subr.mxu0 0.0
    %266 = vmatpush1.xpose.msra.mxu0 0.0
    %267 = vmatprep.subr.mxu0 0.0
    %268 = vmatpush1.xpose.msra.mxu0 0.0
    %269 = vmatprep.subr.mxu0 0.0
    %270 = vmatpush1.xpose.msra.mxu0 0.0
    %271 = vmatprep.subr.mxu0 0.0
    %272 = vmatpush1.xpose.msra.mxu0 0.0
    %273 = vmatprep.subr.mxu0 0.0
    %274 = vmatpush1.xpose.msra.mxu0 0.0
    %275 = vmatprep.subr.mxu0 0.0
    %276 = vmatpush1.xpose.msra.mxu0 %v249
    %277 = vmatprep.subr.mxu0 0.0
    %278 = vmatpush1.xpose.msra.mxu0 %v247
    %279 = vmatprep.subr.mxu0 0.0
    %280 = vmatpush1.xpose.msra.mxu0 %v245
    %281 = vmatprep.subr.mxu0 0.0
    %282 = vmatpush1.xpose.msra.mxu0 %v243
    %283 = vmatprep.subr.mxu0 0.0
    %284 = vmatpush2.xpose.msra.mxu0 0.0
    %285 = vmatprep.subr.mxu0 0.0
    %286 = vmatpush2.xpose.msra.mxu0 0.0
    %287 = vmatprep.subr.mxu0 0.0
    %288 = vmatpush2.xpose.msra.mxu0 0.0
    %289 = vmatprep.subr.mxu0 0.0
    %290 = vmatpush2.xpose.msra.mxu0 0.0
    %291 = vmatprep.subr.mxu0 0.0
    %292 = vmatpush2.xpose.msra.mxu0 0.0
    %293 = vmatprep.subr.mxu0 0.0
    %294 = vmatpush2.xpose.msra.mxu0 0.0
    %295 = vmatprep.subr.mxu0 0.0
    %296 = vmatpush2.xpose.msra.mxu0 0.0
    %297 = vmatprep.subr.mxu0 0.0
    %298 = vmatpush2.xpose.msra.mxu0 0.0
    %299 = vmatprep.subr.mxu0 0.0
    %300 = vmatpush2.xpose.msra.mxu0 0.0
    %301 = vmatprep.subr.mxu0 0.0
    %302 = vmatpush2.xpose.msra.mxu0 0.0
    %303 = vmatprep.subr.mxu0 0.0
    %304 = vmatpush2.xpose.msra.mxu0 0.0
    %305 = vmatprep.subr.mxu0 0.0
    %306 = vmatpush2.xpose.msra.mxu0 0.0
    %307 = vmatprep.subr.mxu0 0.0
    %308 = vmatpush2.xpose.msra.mxu0 0.0
    %309 = vmatprep.subr.mxu0 0.0
    %310 = vmatpush2.xpose.msra.mxu0 0.0
    %311 = vmatprep.subr.mxu0 0.0
    %312 = vmatpush2.xpose.msra.mxu0 0.0
    %313 = vmatprep.subr.mxu0 0.0
    %314 = vmatpush2.xpose.msra.mxu0 0.0
    %315 = vmatprep.mubr.f32.mxu0 0.0
    %316 = vmatmul.mubr.f32.gmra.mxu0 %v241
    %v317 = vpop.f32.mrf.mxu0
    %v318 = vadd.f32 0.0, %v317
    %v319 = vpop.f32.mrf.mxu0
    %320 = vdwg.mxu0
    %325 = vrot.lane.b32.xlu0 %v204, 96
    %v326 = vpop.permute.xlu0 %325
    %327 = vrot.lane.b32.xlu0 %v205, 96
    %v328 = vpop.permute.xlu0 %327
    %329 = vrot.lane.b32.xlu0 %v206, 96
    %v330 = vpop.permute.xlu0 %329
    %331 = vrot.lane.b32.xlu0 %v207, 96
    %v332 = vpop.permute.xlu0 %331
    %v334 = vsel %vm102, %v181, 0
    %v336 = vsel %vm102, %v326, 0
    %v338 = vsel %vm102, %v328, 0
    %v340 = vsel %vm102, %v330, 0
    %v342 = vsel %vm102, %v332, 0
    %344 = vmatprep.subr.mxu0 0.0
    %345 = vmatpush1.xpose.msra.mxu0 0.0
    %346 = vmatprep.subr.mxu0 0.0
    %347 = vmatpush1.xpose.msra.mxu0 0.0
    %348 = vmatprep.subr.mxu0 0.0
    %349 = vmatpush1.xpose.msra.mxu0 0.0
    %350 = vmatprep.subr.mxu0 0.0
    %351 = vmatpush1.xpose.msra.mxu0 0.0
    %352 = vmatprep.subr.mxu0 0.0
    %353 = vmatpush1.xpose.msra.mxu0 0.0
    %354 = vmatprep.subr.mxu0 0.0
    %355 = vmatpush1.xpose.msra.mxu0 0.0
    %356 = vmatprep.subr.mxu0 0.0
    %357 = vmatpush1.xpose.msra.mxu0 0.0
    %358 = vmatprep.subr.mxu0 0.0
    %359 = vmatpush1.xpose.msra.mxu0 0.0
    %360 = vmatprep.subr.mxu0 0.0
    %361 = vmatpush1.xpose.msra.mxu0 0.0
    %362 = vmatprep.subr.mxu0 0.0
    %363 = vmatpush1.xpose.msra.mxu0 0.0
    %364 = vmatprep.subr.mxu0 0.0
    %365 = vmatpush1.xpose.msra.mxu0 0.0
    %366 = vmatprep.subr.mxu0 0.0
    %367 = vmatpush1.xpose.msra.mxu0 0.0
    %368 = vmatprep.subr.mxu0 0.0
    %369 = vmatpush1.xpose.msra.mxu0 %v342
    %370 = vmatprep.subr.mxu0 0.0
    %371 = vmatpush1.xpose.msra.mxu0 %v340
    %372 = vmatprep.subr.mxu0 0.0
    %373 = vmatpush1.xpose.msra.mxu0 %v338
    %374 = vmatprep.subr.mxu0 0.0
    %375 = vmatpush1.xpose.msra.mxu0 %v336
    %376 = vmatprep.subr.mxu0 0.0
    %377 = vmatpush2.xpose.msra.mxu0 0.0
    %378 = vmatprep.subr.mxu0 0.0
    %379 = vmatpush2.xpose.msra.mxu0 0.0
    %380 = vmatprep.subr.mxu0 0.0
    %381 = vmatpush2.xpose.msra.mxu0 0.0
    %382 = vmatprep.subr.mxu0 0.0
    %383 = vmatpush2.xpose.msra.mxu0 0.0
    %384 = vmatprep.subr.mxu0 0.0
    %385 = vmatpush2.xpose.msra.mxu0 0.0
    %386 = vmatprep.subr.mxu0 0.0
    %387 = vmatpush2.xpose.msra.mxu0 0.0
    %388 = vmatprep.subr.mxu0 0.0
    %389 = vmatpush2.xpose.msra.mxu0 0.0
    %390 = vmatprep.subr.mxu0 0.0
    %391 = vmatpush2.xpose.msra.mxu0 0.0
    %392 = vmatprep.subr.mxu0 0.0
    %393 = vmatpush2.xpose.msra.mxu0 0.0
    %394 = vmatprep.subr.mxu0 0.0
    %395 = vmatpush2.xpose.msra.mxu0 0.0
    %396 = vmatprep.subr.mxu0 0.0
    %397 = vmatpush2.xpose.msra.mxu0 0.0
    %398 = vmatprep.subr.mxu0 0.0
    %399 = vmatpush2.xpose.msra.mxu0 0.0
    %400 = vmatprep.subr.mxu0 0.0
    %401 = vmatpush2.xpose.msra.mxu0 0.0
    %402 = vmatprep.subr.mxu0 0.0
    %403 = vmatpush2.xpose.msra.mxu0 0.0
    %404 = vmatprep.subr.mxu0 0.0
    %405 = vmatpush2.xpose.msra.mxu0 0.0
    %406 = vmatprep.subr.mxu0 0.0
    %407 = vmatpush2.xpose.msra.mxu0 0.0
    %408 = vmatprep.mubr.f32.mxu0 0.0
    %409 = vmatmul.mubr.f32.gmra.mxu0 %v334
    %v410 = vpop.f32.mrf.mxu0
    %v411 = vadd.f32 0.0, %v410
    %v412 = vpop.f32.mrf.mxu0
    %413 = vdwg.mxu0
    %v414 = vsel %vm102, %v318, -inf
    %415 = vmax.xlane.f32.xlu0 %v414
    %v416 = vpop.xlane.xlu0 %415
    %v417 = vsel %vm102, %v411, -inf
    %418 = vmax.xlane.f32.xlu0 %v417
    %v419 = vpop.xlane.xlu0 %418
    %v420 = vsub.f32 %v318, %v416
    %v421 = vsub.f32 %v411, %v419
    %v422 = vmul.f32 %v420, 1.442695
    %v423 = vpow.pop %v422
    %v424 = vmul.f32 %v421, 1.442695
    %v425 = vpow.pop %v424
    %v427 = vsel %vm102, %v423, 0
    %v430 = vsel %vm102, %v425, 0
    %432 = vmatprep.subr.mxu0 0.0
    %433 = vmatpush1.msra.mxu0 0.0
    %434 = vmatprep.subr.mxu0 0.0
    %435 = vmatpush1.msra.mxu0 0.0
    %436 = vmatprep.subr.mxu0 0.0
    %437 = vmatpush1.msra.mxu0 0.0
    %438 = vmatprep.subr.mxu0 0.0
    %439 = vmatpush1.msra.mxu0 0.0
    %440 = vmatprep.subr.mxu0 0.0
    %441 = vmatpush1.msra.mxu0 0.0
    %442 = vmatprep.subr.mxu0 0.0
    %443 = vmatpush1.msra.mxu0 0.0
    %444 = vmatprep.subr.mxu0 0.0
    %445 = vmatpush1.msra.mxu0 0.0
    %446 = vmatprep.subr.mxu0 0.0
    %447 = vmatpush1.msra.mxu0 0.0
    %448 = vmatprep.subr.mxu0 0.0
    %449 = vmatpush1.msra.mxu0 0.0
    %450 = vmatprep.subr.mxu0 0.0
    %451 = vmatpush1.msra.mxu0 0.0
    %452 = vmatprep.subr.mxu0 0.0
    %453 = vmatpush1.msra.mxu0 0.0
    %454 = vmatprep.subr.mxu0 0.0
    %455 = vmatpush1.msra.mxu0 0.0
    %456 = vmatprep.subr.mxu0 0.0
    %457 = vmatpush1.msra.mxu0 %v76
    %458 = vmatprep.subr.mxu0 0.0
    %459 = vmatpush1.msra.mxu0 %v75
    %460 = vmatprep.subr.mxu0 0.0
    %461 = vmatpush1.msra.mxu0 %v74
    %462 = vmatprep.subr.mxu0 0.0
    %463 = vmatpush1.msra.mxu0 %v73
    %464 = vmatprep.subr.mxu0 0.0
    %465 = vmatpush2.msra.mxu0 0.0
    %466 = vmatprep.subr.mxu0 0.0
    %467 = vmatpush2.msra.mxu0 0.0
    %468 = vmatprep.subr.mxu0 0.0
    %469 = vmatpush2.msra.mxu0 0.0
    %470 = vmatprep.subr.mxu0 0.0
    %471 = vmatpush2.msra.mxu0 0.0
    %472 = vmatprep.subr.mxu0 0.0
    %473 = vmatpush2.msra.mxu0 0.0
    %474 = vmatprep.subr.mxu0 0.0
    %475 = vmatpush2.msra.mxu0 0.0
    %476 = vmatprep.subr.mxu0 0.0
    %477 = vmatpush2.msra.mxu0 0.0
    %478 = vmatprep.subr.mxu0 0.0
    %479 = vmatpush2.msra.mxu0 0.0
    %480 = vmatprep.subr.mxu0 0.0
    %481 = vmatpush2.msra.mxu0 0.0
    %482 = vmatprep.subr.mxu0 0.0
    %483 = vmatpush2.msra.mxu0 0.0
    %484 = vmatprep.subr.mxu0 0.0
    %485 = vmatpush2.msra.mxu0 0.0
    %486 = vmatprep.subr.mxu0 0.0
    %487 = vmatpush2.msra.mxu0 0.0
    %488 = vmatprep.subr.mxu0 0.0
    %489 = vmatpush2.msra.mxu0 0.0
    %490 = vmatprep.subr.mxu0 0.0
    %491 = vmatpush2.msra.mxu0 0.0
    %492 = vmatprep.subr.mxu0 0.0
    %493 = vmatpush2.msra.mxu0 0.0
    %494 = vmatprep.subr.mxu0 0.0
    %495 = vmatpush2.msra.mxu0 0.0
    %496 = vmatprep.mubr.f32.mxu0 0.0
    %497 = vmatmul.mubr.f32.gmra.mxu0 %v427
    %v498 = vpop.f32.mrf.mxu0
    %v499 = vadd.f32 0.0, %v498
    %v500 = vpop.f32.mrf.mxu0
    %501 = vmatprep.mubr.f32.mxu0 0.0
    %502 = vmatmul.mubr.f32.gmra.mxu0 %v430
    %v503 = vpop.f32.mrf.mxu0
    %v504 = vadd.f32 0.0, %v503
    %v505 = vpop.f32.mrf.mxu0
    %506 = vdwg.mxu0
    %v507 = vrcp.pop %v499
    %v508 = vmul.f32 %v423, %v507
    %v509 = vrcp.pop %v504
    %v510 = vmul.f32 %v425, %v509
    %515 = vrot.lane.b32.xlu0 %v220, 64
    %v516 = vpop.permute.xlu0 %515
    %517 = vrot.lane.b32.xlu0 %v221, 64
    %v518 = vpop.permute.xlu0 %517
    %519 = vrot.lane.b32.xlu0 %v222, 64
    %v520 = vpop.permute.xlu0 %519
    %521 = vrot.lane.b32.xlu0 %v223, 64
    %v522 = vpop.permute.xlu0 %521
    %v528 = vsel %vm102, %v508, 0
    %530 = vmatprep.subr.mxu0 0.0
    %531 = vmatpush1.msra.mxu0 0.0
    %532 = vmatprep.subr.mxu0 0.0
    %533 = vmatpush1.msra.mxu0 0.0
    %534 = vmatprep.subr.mxu0 0.0
    %535 = vmatpush1.msra.mxu0 0.0
    %536 = vmatprep.subr.mxu0 0.0
    %537 = vmatpush1.msra.mxu0 0.0
    %538 = vmatprep.subr.mxu0 0.0
    %539 = vmatpush1.msra.mxu0 0.0
    %540 = vmatprep.subr.mxu0 0.0
    %541 = vmatpush1.msra.mxu0 0.0
    %542 = vmatprep.subr.mxu0 0.0
    %543 = vmatpush1.msra.mxu0 0.0
    %544 = vmatprep.subr.mxu0 0.0
    %545 = vmatpush1.msra.mxu0 0.0
    %546 = vmatprep.subr.mxu0 0.0
    %547 = vmatpush1.msra.mxu0 0.0
    %548 = vmatprep.subr.mxu0 0.0
    %549 = vmatpush1.msra.mxu0 0.0
    %550 = vmatprep.subr.mxu0 0.0
    %551 = vmatpush1.msra.mxu0 0.0
    %552 = vmatprep.subr.mxu0 0.0
    %553 = vmatpush1.msra.mxu0 0.0
    %554 = vmatprep.subr.mxu0 0.0
    %555 = vmatpush1.msra.mxu0 %v522
    %556 = vmatprep.subr.mxu0 0.0
    %557 = vmatpush1.msra.mxu0 %v520
    %558 = vmatprep.subr.mxu0 0.0
    %559 = vmatpush1.msra.mxu0 %v518
    %560 = vmatprep.subr.mxu0 0.0
    %561 = vmatpush1.msra.mxu0 %v516
    %562 = vmatprep.subr.mxu0 0.0
    %563 = vmatpush2.msra.mxu0 0.0
    %564 = vmatprep.subr.mxu0 0.0
    %565 = vmatpush2.msra.mxu0 0.0
    %566 = vmatprep.subr.mxu0 0.0
    %567 = vmatpush2.msra.mxu0 0.0
    %568 = vmatprep.subr.mxu0 0.0
    %569 = vmatpush2.msra.mxu0 0.0
    %570 = vmatprep.subr.mxu0 0.0
    %571 = vmatpush2.msra.mxu0 0.0
    %572 = vmatprep.subr.mxu0 0.0
    %573 = vmatpush2.msra.mxu0 0.0
    %574 = vmatprep.subr.mxu0 0.0
    %575 = vmatpush2.msra.mxu0 0.0
    %576 = vmatprep.subr.mxu0 0.0
    %577 = vmatpush2.msra.mxu0 0.0
    %578 = vmatprep.subr.mxu0 0.0
    %579 = vmatpush2.msra.mxu0 0.0
    %580 = vmatprep.subr.mxu0 0.0
    %581 = vmatpush2.msra.mxu0 0.0
    %582 = vmatprep.subr.mxu0 0.0
    %583 = vmatpush2.msra.mxu0 0.0
    %584 = vmatprep.subr.mxu0 0.0
    %585 = vmatpush2.msra.mxu0 0.0
    %586 = vmatprep.subr.mxu0 0.0
    %587 = vmatpush2.msra.mxu0 0.0
    %588 = vmatprep.subr.mxu0 0.0
    %589 = vmatpush2.msra.mxu0 0.0
    %590 = vmatprep.subr.mxu0 0.0
    %591 = vmatpush2.msra.mxu0 0.0
    %592 = vmatprep.subr.mxu0 0.0
    %593 = vmatpush2.msra.mxu0 0.0
    %594 = vmatprep.mubr.f32.mxu0 0.0
    %595 = vmatmul.mubr.f32.gmra.mxu0 %v528
    %v596 = vpop.f32.mrf.mxu0
    %v597 = vadd.f32 0.0, %v596
    %v598 = vpop.f32.mrf.mxu0
    %599 = vdwg.mxu0
    %604 = vrot.lane.b32.xlu0 %v224, 64
    %v605 = vpop.permute.xlu0 %604
    %606 = vrot.lane.b32.xlu0 %v225, 64
    %v607 = vpop.permute.xlu0 %606
    %608 = vrot.lane.b32.xlu0 %v226, 64
    %v609 = vpop.permute.xlu0 %608
    %610 = vrot.lane.b32.xlu0 %v227, 64
    %v611 = vpop.permute.xlu0 %610
    %v617 = vsel %vm102, %v510, 0
    %619 = vmatprep.subr.mxu0 0.0
    %620 = vmatpush1.msra.mxu0 0.0
    %621 = vmatprep.subr.mxu0 0.0
    %622 = vmatpush1.msra.mxu0 0.0
    %623 = vmatprep.subr.mxu0 0.0
    %624 = vmatpush1.msra.mxu0 0.0
    %625 = vmatprep.subr.mxu0 0.0
    %626 = vmatpush1.msra.mxu0 0.0
    %627 = vmatprep.subr.mxu0 0.0
    %628 = vmatpush1.msra.mxu0 0.0
    %629 = vmatprep.subr.mxu0 0.0
    %630 = vmatpush1.msra.mxu0 0.0
    %631 = vmatprep.subr.mxu0 0.0
    %632 = vmatpush1.msra.mxu0 0.0
    %633 = vmatprep.subr.mxu0 0.0
    %634 = vmatpush1.msra.mxu0 0.0
    %635 = vmatprep.subr.mxu0 0.0
    %636 = vmatpush1.msra.mxu0 0.0
    %637 = vmatprep.subr.mxu0 0.0
    %638 = vmatpush1.msra.mxu0 0.0
    %639 = vmatprep.subr.mxu0 0.0
    %640 = vmatpush1.msra.mxu0 0.0
    %641 = vmatprep.subr.mxu0 0.0
    %642 = vmatpush1.msra.mxu0 0.0
    %643 = vmatprep.subr.mxu0 0.0
    %644 = vmatpush1.msra.mxu0 %v611
    %645 = vmatprep.subr.mxu0 0.0
    %646 = vmatpush1.msra.mxu0 %v609
    %647 = vmatprep.subr.mxu0 0.0
    %648 = vmatpush1.msra.mxu0 %v607
    %649 = vmatprep.subr.mxu0 0.0
    %650 = vmatpush1.msra.mxu0 %v605
    %651 = vmatprep.subr.mxu0 0.0
    %652 = vmatpush2.msra.mxu0 0.0
    %653 = vmatprep.subr.mxu0 0.0
    %654 = vmatpush2.msra.mxu0 0.0
    %655 = vmatprep.subr.mxu0 0.0
    %656 = vmatpush2.msra.mxu0 0.0
    %657 = vmatprep.subr.mxu0 0.0
    %658 = vmatpush2.msra.mxu0 0.0
    %659 = vmatprep.subr.mxu0 0.0
    %660 = vmatpush2.msra.mxu0 0.0
    %661 = vmatprep.subr.mxu0 0.0
    %662 = vmatpush2.msra.mxu0 0.0
    %663 = vmatprep.subr.mxu0 0.0
    %664 = vmatpush2.msra.mxu0 0.0
    %665 = vmatprep.subr.mxu0 0.0
    %666 = vmatpush2.msra.mxu0 0.0
    %667 = vmatprep.subr.mxu0 0.0
    %668 = vmatpush2.msra.mxu0 0.0
    %669 = vmatprep.subr.mxu0 0.0
    %670 = vmatpush2.msra.mxu0 0.0
    %671 = vmatprep.subr.mxu0 0.0
    %672 = vmatpush2.msra.mxu0 0.0
    %673 = vmatprep.subr.mxu0 0.0
    %674 = vmatpush2.msra.mxu0 0.0
    %675 = vmatprep.subr.mxu0 0.0
    %676 = vmatpush2.msra.mxu0 0.0
    %677 = vmatprep.subr.mxu0 0.0
    %678 = vmatpush2.msra.mxu0 0.0
    %679 = vmatprep.subr.mxu0 0.0
    %680 = vmatpush2.msra.mxu0 0.0
    %681 = vmatprep.subr.mxu0 0.0
    %682 = vmatpush2.msra.mxu0 0.0
    %683 = vmatprep.mubr.f32.mxu0 0.0
    %684 = vmatmul.mubr.f32.gmra.mxu0 %v617
    %v685 = vpop.f32.mrf.mxu0
    %v686 = vadd.f32 0.0, %v685
    %v687 = vpop.f32.mrf.mxu0
    %688 = vdwg.mxu0
    %v689 = vlaneseq
    %v690 = vshrl.u32 %v689, 7
    %v691 = vsub.s32 1, %v690
    %v692 = vrot.slane %v97, %v691
    %v694 = vsel %vm102, %v597, 0
    %v697 = vsel %vm102, %v686, 0
    %699 = vmatprep.subr.mxu0 0.0
    %700 = vmatpush1.msra.mxu0 0.0
    %701 = vmatprep.subr.mxu0 0.0
    %702 = vmatpush1.msra.mxu0 0.0
    %703 = vmatprep.subr.mxu0 0.0
    %704 = vmatpush1.msra.mxu0 0.0
    %705 = vmatprep.subr.mxu0 0.0
    %706 = vmatpush1.msra.mxu0 0.0
    %707 = vmatprep.subr.mxu0 0.0
    %708 = vmatpush1.msra.mxu0 0.0
    %709 = vmatprep.subr.mxu0 0.0
    %710 = vmatpush1.msra.mxu0 0.0
    %711 = vmatprep.subr.mxu0 0.0
    %712 = vmatpush1.msra.mxu0 0.0
    %713 = vmatprep.subr.mxu0 0.0
    %714 = vmatpush1.msra.mxu0 0.0
    %715 = vmatprep.subr.mxu0 0.0
    %716 = vmatpush1.msra.mxu0 0.0
    %717 = vmatprep.subr.mxu0 0.0
    %718 = vmatpush1.msra.mxu0 0.0
    %719 = vmatprep.subr.mxu0 0.0
    %720 = vmatpush1.msra.mxu0 0.0
    %721 = vmatprep.subr.mxu0 0.0
    %722 = vmatpush1.msra.mxu0 0.0
    %723 = vmatprep.subr.mxu0 0.0
    %724 = vmatpush1.msra.mxu0 %v84
    %725 = vmatprep.subr.mxu0 0.0
    %726 = vmatpush1.msra.mxu0 %v83
    %727 = vmatprep.subr.mxu0 0.0
    %728 = vmatpush1.msra.mxu0 %v82
    %729 = vmatprep.subr.mxu0 0.0
    %730 = vmatpush1.msra.mxu0 %v81
    %731 = vmatprep.subr.mxu0 0.0
    %732 = vmatpush2.msra.mxu0 0.0
    %733 = vmatprep.subr.mxu0 0.0
    %734 = vmatpush2.msra.mxu0 0.0
    %735 = vmatprep.subr.mxu0 0.0
    %736 = vmatpush2.msra.mxu0 0.0
    %737 = vmatprep.subr.mxu0 0.0
    %738 = vmatpush2.msra.mxu0 0.0
    %739 = vmatprep.subr.mxu0 0.0
    %740 = vmatpush2.msra.mxu0 0.0
    %741 = vmatprep.subr.mxu0 0.0
    %742 = vmatpush2.msra.mxu0 0.0
    %743 = vmatprep.subr.mxu0 0.0
    %744 = vmatpush2.msra.mxu0 0.0
    %745 = vmatprep.subr.mxu0 0.0
    %746 = vmatpush2.msra.mxu0 0.0
    %747 = vmatprep.subr.mxu0 0.0
    %748 = vmatpush2.msra.mxu0 0.0
    %749 = vmatprep.subr.mxu0 0.0
    %750 = vmatpush2.msra.mxu0 0.0
    %751 = vmatprep.subr.mxu0 0.0
    %752 = vmatpush2.msra.mxu0 0.0
    %753 = vmatprep.subr.mxu0 0.0
    %754 = vmatpush2.msra.mxu0 0.0
    %755 = vmatprep.subr.mxu0 0.0
    %756 = vmatpush2.msra.mxu0 0.0
    %757 = vmatprep.subr.mxu0 0.0
    %758 = vmatpush2.msra.mxu0 0.0
    %759 = vmatprep.subr.mxu0 0.0
    %760 = vmatpush2.msra.mxu0 0.0
    %761 = vmatprep.subr.mxu0 0.0
    %762 = vmatpush2.msra.mxu0 0.0
    %763 = vmatprep.mubr.f32.mxu0 0.0
    %764 = vmatmul.mubr.f32.gmra.mxu0 %v694
    %v765 = vpop.f32.mrf.mxu0
    %v766 = vadd.f32 %v692, %v765
    %v767 = vpop.f32.mrf.mxu0
    %768 = vmatprep.mubr.f32.mxu0 0.0
    %769 = vmatmul.mubr.f32.gmra.mxu0 %v697
    %v770 = vpop.f32.mrf.mxu0
    %v771 = vadd.f32 %v692, %v770
    %v772 = vpop.f32.mrf.mxu0
    %773 = vdwg.mxu0
    %v774 = vadd.f32 %v55, %v766
    %v775 = vadd.f32 %v56, %v771
    %v776 = vsel %vm102, %v774, 0.0
    %777 = vadd.xlane.f32.xlu0 %v776
    %v778 = vpop.xlane.xlu0 %777
    %v779 = vsel %vm102, %v775, 0.0
    %780 = vadd.xlane.f32.xlu0 %v779
    %v781 = vpop.xlane.xlu0 %780
    %v782 = vrcp.pop 32.0
    %v783 = vmul.f32 %v778, %v782
    %v784 = vmul.f32 %v781, %v782
    %v785 = vsub.f32 %v774, %v783
    %v786 = vsub.f32 %v775, %v784
    %v787 = vmul.f32 %v785, %v785
    %v788 = vmul.f32 %v786, %v786
    %v789 = vsel %vm102, %v787, 0.0
    %790 = vadd.xlane.f32.xlu0 %v789
    %v791 = vpop.xlane.xlu0 %790
    %v792 = vsel %vm102, %v788, 0.0
    %793 = vadd.xlane.f32.xlu0 %v792
    %v794 = vpop.xlane.xlu0 %793
    %v795 = vmul.f32 %v791, %v782
    %v796 = vmul.f32 %v794, %v782
    %v797 = vadd.f32 %v795, 1e-05
    %v798 = vadd.f32 %v796, 1e-05
    %v799 = vrsqrt.pop %v797
    %v800 = vrsqrt.pop %v798
    %v801 = vmul.f32 %v785, %v799
    %v802 = vmul.f32 %v786, %v800
    %v803 = vlaneseq
    %v804 = vshrl.u32 %v803, 7
    %v805 = vsub.s32 4, %v804
    %v806 = vrot.slane %v97, %v805
    %v807 = vmul.f32 %v801, %v806
    %v808 = vmul.f32 %v802, %v806
    %v809 = vlaneseq
    %v810 = vshrl.u32 %v809, 7
    %v811 = vsub.s32 5, %v810
    %v812 = vrot.slane %v97, %v811
    %v813 = vadd.f32 %v807, %v812
    %v814 = vadd.f32 %v808, %v812
    %v815 = vlaneseq
    %v816 = vshrl.u32 %v815, 7
    %v817 = vsub.s32 2, %v816
    %v818 = vrot.slane %v97, %v817
    %v820 = vsel %vm102, %v813, 0
    %v823 = vsel %vm102, %v814, 0
    %825 = vmatprep.subr.mxu0 0.0
    %826 = vmatpush1.msra.mxu0 0.0
    %827 = vmatprep.subr.mxu0 0.0
    %828 = vmatpush1.msra.mxu0 0.0
    %829 = vmatprep.subr.mxu0 0.0
    %830 = vmatpush1.msra.mxu0 0.0
    %831 = vmatprep.subr.mxu0 0.0
    %832 = vmatpush1.msra.mxu0 0.0
    %833 = vmatprep.subr.mxu0 0.0
    %834 = vmatpush1.msra.mxu0 0.0
    %835 = vmatprep.subr.mxu0 0.0
    %836 = vmatpush1.msra.mxu0 0.0
    %837 = vmatprep.subr.mxu0 0.0
    %838 = vmatpush1.msra.mxu0 0.0
    %839 = vmatprep.subr.mxu0 0.0
    %840 = vmatpush1.msra.mxu0 0.0
    %841 = vmatprep.subr.mxu0 0.0
    %842 = vmatpush1.msra.mxu0 0.0
    %843 = vmatprep.subr.mxu0 0.0
    %844 = vmatpush1.msra.mxu0 0.0
    %845 = vmatprep.subr.mxu0 0.0
    %846 = vmatpush1.msra.mxu0 0.0
    %847 = vmatprep.subr.mxu0 0.0
    %848 = vmatpush1.msra.mxu0 0.0
    %849 = vmatprep.subr.mxu0 0.0
    %850 = vmatpush1.msra.mxu0 %v88
    %851 = vmatprep.subr.mxu0 0.0
    %852 = vmatpush1.msra.mxu0 %v87
    %853 = vmatprep.subr.mxu0 0.0
    %854 = vmatpush1.msra.mxu0 %v86
    %855 = vmatprep.subr.mxu0 0.0
    %856 = vmatpush1.msra.mxu0 %v85
    %857 = vmatprep.subr.mxu0 0.0
    %858 = vmatpush2.msra.mxu0 0.0
    %859 = vmatprep.subr.mxu0 0.0
    %860 = vmatpush2.msra.mxu0 0.0
    %861 = vmatprep.subr.mxu0 0.0
    %862 = vmatpush2.msra.mxu0 0.0
    %863 = vmatprep.subr.mxu0 0.0
    %864 = vmatpush2.msra.mxu0 0.0
    %865 = vmatprep.subr.mxu0 0.0
    %866 = vmatpush2.msra.mxu0 0.0
    %867 = vmatprep.subr.mxu0 0.0
    %868 = vmatpush2.msra.mxu0 0.0
    %869 = vmatprep.subr.mxu0 0.0
    %870 = vmatpush2.msra.mxu0 0.0
    %871 = vmatprep.subr.mxu0 0.0
    %872 = vmatpush2.msra.mxu0 0.0
    %873 = vmatprep.subr.mxu0 0.0
    %874 = vmatpush2.msra.mxu0 0.0
    %875 = vmatprep.subr.mxu0 0.0
    %876 = vmatpush2.msra.mxu0 0.0
    %877 = vmatprep.subr.mxu0 0.0
    %878 = vmatpush2.msra.mxu0 0.0
    %879 = vmatprep.subr.mxu0 0.0
    %880 = vmatpush2.msra.mxu0 0.0
    %881 = vmatprep.subr.mxu0 0.0
    %882 = vmatpush2.msra.mxu0 0.0
    %883 = vmatprep.subr.mxu0 0.0
    %884 = vmatpush2.msra.mxu0 0.0
    %885 = vmatprep.subr.mxu0 0.0
    %886 = vmatpush2.msra.mxu0 0.0
    %887 = vmatprep.subr.mxu0 0.0
    %888 = vmatpush2.msra.mxu0 0.0
    %889 = vmatprep.mubr.f32.mxu0 0.0
    %890 = vmatmul.mubr.f32.gmra.mxu0 %v820
    %v891 = vpop.f32.mrf.mxu0
    %v892 = vadd.f32 %v818, %v891
    %v893 = vpop.f32.mrf.mxu0
    %894 = vmatprep.mubr.f32.mxu0 0.0
    %895 = vmatmul.mubr.f32.gmra.mxu0 %v823
    %v896 = vpop.f32.mrf.mxu0
    %v897 = vadd.f32 %v818, %v896
    %v898 = vpop.f32.mrf.mxu0
    %899 = vdwg.mxu0
    %v900 = vmax.f32 %v892, 0.0
    %v901 = vmax.f32 %v897, 0.0
    %v902 = vlaneseq
    %v903 = vshrl.u32 %v902, 7
    %v904 = vsub.s32 3, %v903
    %v905 = vrot.slane %v97, %v904
    %vm906 = vcmask 523264
    %v908 = vsel %vm906, %v900, 0
    %v911 = vsel %vm906, %v901, 0
    %913 = vmatprep.subr.mxu0 0.0
    %914 = vmatpush1.msra.mxu0 0.0
    %915 = vmatprep.subr.mxu0 0.0
    %916 = vmatpush1.msra.mxu0 0.0
    %917 = vmatprep.subr.mxu0 0.0
    %918 = vmatpush1.msra.mxu0 0.0
    %919 = vmatprep.subr.mxu0 0.0
    %920 = vmatpush1.msra.mxu0 0.0
    %921 = vmatprep.subr.mxu0 0.0
    %922 = vmatpush1.msra.mxu0 0.0
    %923 = vmatprep.subr.mxu0 0.0
    %924 = vmatpush1.msra.mxu0 0.0
    %925 = vmatprep.subr.mxu0 0.0
    %926 = vmatpush1.msra.mxu0 0.0
    %927 = vmatprep.subr.mxu0 0.0
    %928 = vmatpush1.msra.mxu0 0.0
    %929 = vmatprep.subr.mxu0 0.0
    %930 = vmatpush1.msra.mxu0 %v96
    %931 = vmatprep.subr.mxu0 0.0
    %932 = vmatpush1.msra.mxu0 %v95
    %933 = vmatprep.subr.mxu0 0.0
    %934 = vmatpush1.msra.mxu0 %v94
    %935 = vmatprep.subr.mxu0 0.0
    %936 = vmatpush1.msra.mxu0 %v93
    %937 = vmatprep.subr.mxu0 0.0
    %938 = vmatpush1.msra.mxu0 %v92
    %939 = vmatprep.subr.mxu0 0.0
    %940 = vmatpush1.msra.mxu0 %v91
    %941 = vmatprep.subr.mxu0 0.0
    %942 = vmatpush1.msra.mxu0 %v90
    %943 = vmatprep.subr.mxu0 0.0
    %944 = vmatpush1.msra.mxu0 %v89
    %945 = vmatprep.subr.mxu0 0.0
    %946 = vmatpush2.msra.mxu0 0.0
    %947 = vmatprep.subr.mxu0 0.0
    %948 = vmatpush2.msra.mxu0 0.0
    %949 = vmatprep.subr.mxu0 0.0
    %950 = vmatpush2.msra.mxu0 0.0
    %951 = vmatprep.subr.mxu0 0.0
    %952 = vmatpush2.msra.mxu0 0.0
    %953 = vmatprep.subr.mxu0 0.0
    %954 = vmatpush2.msra.mxu0 0.0
    %955 = vmatprep.subr.mxu0 0.0
    %956 = vmatpush2.msra.mxu0 0.0
    %957 = vmatprep.subr.mxu0 0.0
    %958 = vmatpush2.msra.mxu0 0.0
    %959 = vmatprep.subr.mxu0 0.0
    %960 = vmatpush2.msra.mxu0 0.0
    %961 = vmatprep.subr.mxu0 0.0
    %962 = vmatpush2.msra.mxu0 0.0
    %963 = vmatprep.subr.mxu0 0.0
    %964 = vmatpush2.msra.mxu0 0.0
    %965 = vmatprep.subr.mxu0 0.0
    %966 = vmatpush2.msra.mxu0 0.0
    %967 = vmatprep.subr.mxu0 0.0
    %968 = vmatpush2.msra.mxu0 0.0
    %969 = vmatprep.subr.mxu0 0.0
    %970 = vmatpush2.msra.mxu0 0.0
    %971 = vmatprep.subr.mxu0 0.0
    %972 = vmatpush2.msra.mxu0 0.0
    %973 = vmatprep.subr.mxu0 0.0
    %974 = vmatpush2.msra.mxu0 0.0
    %975 = vmatprep.subr.mxu0 0.0
    %976 = vmatpush2.msra.mxu0 0.0
    %977 = vmatprep.mubr.f32.mxu0 0.0
    %978 = vmatmul.mubr.f32.gmra.mxu0 %v908
    %v979 = vpop.f32.mrf.mxu0
    %v980 = vadd.f32 %v905, %v979
    %v981 = vpop.f32.mrf.mxu0
    %982 = vmatprep.mubr.f32.mxu0 0.0
    %983 = vmatmul.mubr.f32.gmra.mxu0 %v911
    %v984 = vpop.f32.mrf.mxu0
    %v985 = vadd.f32 %v905, %v984
    %v986 = vpop.f32.mrf.mxu0
    %987 = vdwg.mxu0
    %v988 = vadd.f32 %v813, %v980
    %v989 = vadd.f32 %v814, %v985
    %v990 = vsel %vm102, %v988, 0.0
    %991 = vadd.xlane.f32.xlu0 %v990
    %v992 = vpop.xlane.xlu0 %991
    %v993 = vsel %vm102, %v989, 0.0
    %994 = vadd.xlane.f32.xlu0 %v993
    %v995 = vpop.xlane.xlu0 %994
    %v996 = vmul.f32 %v992, %v782
    %v997 = vmul.f32 %v995, %v782
    %v998 = vsub.f32 %v988, %v996
    %v999 = vsub.f32 %v989, %v997
    %v1000 = vmul.f32 %v998, %v998
    %v1001 = vmul.f32 %v999, %v999
    %v1002 = vsel %vm102, %v1000, 0.0
    %1003 = vadd.xlane.f32.xlu0 %v1002
    %v1004 = vpop.xlane.xlu0 %1003
    %v1005 = vsel %vm102, %v1001, 0.0
    %1006 = vadd.xlane.f32.xlu0 %v1005
    %v1007 = vpop.xlane.xlu0 %1006
    %v1008 = vmul.f32 %v1004, %v782
    %v1009 = vmul.f32 %v1007, %v782
    %v1010 = vadd.f32 %v1008, 1e-05
    %v1011 = vadd.f32 %v1009, 1e-05
    %v1012 = vrsqrt.pop %v1010
    %v1013 = vrsqrt.pop %v1011
    %v1014 = vmul.f32 %v998, %v1012
    %v1015 = vmul.f32 %v999, %v1013
    %v1016 = vlaneseq
    %v1017 = vshrl.u32 %v1016, 7
    %v1018 = vsub.s32 6, %v1017
    %v1019 = vrot.slane %v97, %v1018
    %v1020 = vmul.f32 %v1014, %v1019
    %v1021 = vmul.f32 %v1015, %v1019
    %v1022 = vlaneseq
    %v1023 = vshrl.u32 %v1022, 7
    %v1024 = vsub.s32 7, %v1023
    %v1025 = vrot.slane %v97, %v1024
    %v1026 = vadd.f32 %v1020, %v1025
    %v1027 = vadd.f32 %v1021, %v1025
    %s1028 = scalar_lea.vmem %s1, 32
    %v1029 = vld [vmem:[%s1028] sm:$0xff]
    %v1030 = vld [vmem:[%s1028 + $0x8] sm:$0xff]
    %v1031 = vld [vmem:[%s1028 + $0x10] sm:$0xff]
    %v1032 = vld [vmem:[%s1028 + $0x18] sm:$0xff]
    %s1033 = scalar_lea.vmem %s2, 32
    %v1034 = vld [vmem:[%s1033] sm:$0xff]
    %v1035 = vld [vmem:[%s1033 + $0x8] sm:$0xff]
    %v1036 = vld [vmem:[%s1033 + $0x10] sm:$0xff]
    %v1037 = vld [vmem:[%s1033 + $0x18] sm:$0xff]
    %s1038 = scalar_lea.vmem %s3, 32
    %v1039 = vld [vmem:[%s1038] sm:$0xff]
    %v1040 = vld [vmem:[%s1038 + $0x8] sm:$0xff]
    %v1041 = vld [vmem:[%s1038 + $0x10] sm:$0xff]
    %v1042 = vld [vmem:[%s1038 + $0x18] sm:$0xff]
    %s1043 = scalar_lea.vmem %s4, 64
    %v1044 = vld [vmem:[%s1043] sm:$0xff]
    %v1045 = vld [vmem:[%s1043 + $0x8] sm:$0xff]
    %v1046 = vld [vmem:[%s1043 + $0x10] sm:$0xff]
    %v1047 = vld [vmem:[%s1043 + $0x18] sm:$0xff]
    %v1048 = vld [vmem:[%s1043 + $0x20] sm:$0xff]
    %v1049 = vld [vmem:[%s1043 + $0x28] sm:$0xff]
    %v1050 = vld [vmem:[%s1043 + $0x30] sm:$0xff]
    %v1051 = vld [vmem:[%s1043 + $0x38] sm:$0xff]
    %s1052 = scalar_lea.vmem [#allocation2], 8
    %v1053 = vld [vmem:[%s1052] sm:$0xff]
    %v1054 = vlaneseq
    %v1055 = vshrl.u32 %v1054, 7
    %v1056 = vsub.s32 0, %v1055
    %v1057 = vrot.slane %v1053, %v1056
    %v1059 = vsel %vm102, %v1026, 0
    %v1062 = vsel %vm102, %v1027, 0
    %1064 = vmatprep.subr.mxu0 0.0
    %1065 = vmatpush1.msra.mxu0 0.0
    %1066 = vmatprep.subr.mxu0 0.0
    %1067 = vmatpush1.msra.mxu0 0.0
    %1068 = vmatprep.subr.mxu0 0.0
    %1069 = vmatpush1.msra.mxu0 0.0
    %1070 = vmatprep.subr.mxu0 0.0
    %1071 = vmatpush1.msra.mxu0 0.0
    %1072 = vmatprep.subr.mxu0 0.0
    %1073 = vmatpush1.msra.mxu0 0.0
    %1074 = vmatprep.subr.mxu0 0.0
    %1075 = vmatpush1.msra.mxu0 0.0
    %1076 = vmatprep.subr.mxu0 0.0
    %1077 = vmatpush1.msra.mxu0 0.0
    %1078 = vmatprep.subr.mxu0 0.0
    %1079 = vmatpush1.msra.mxu0 0.0
    %1080 = vmatprep.subr.mxu0 0.0
    %1081 = vmatpush1.msra.mxu0 0.0
    %1082 = vmatprep.subr.mxu0 0.0
    %1083 = vmatpush1.msra.mxu0 0.0
    %1084 = vmatprep.subr.mxu0 0.0
    %1085 = vmatpush1.msra.mxu0 0.0
    %1086 = vmatprep.subr.mxu0 0.0
    %1087 = vmatpush1.msra.mxu0 0.0
    %1088 = vmatprep.subr.mxu0 0.0
    %1089 = vmatpush1.msra.mxu0 %v1032
    %1090 = vmatprep.subr.mxu0 0.0
    %1091 = vmatpush1.msra.mxu0 %v1031
    %1092 = vmatprep.subr.mxu0 0.0
    %1093 = vmatpush1.msra.mxu0 %v1030
    %1094 = vmatprep.subr.mxu0 0.0
    %1095 = vmatpush1.msra.mxu0 %v1029
    %1096 = vmatprep.subr.mxu0 0.0
    %1097 = vmatpush2.msra.mxu0 0.0
    %1098 = vmatprep.subr.mxu0 0.0
    %1099 = vmatpush2.msra.mxu0 0.0
    %1100 = vmatprep.subr.mxu0 0.0
    %1101 = vmatpush2.msra.mxu0 0.0
    %1102 = vmatprep.subr.mxu0 0.0
    %1103 = vmatpush2.msra.mxu0 0.0
    %1104 = vmatprep.subr.mxu0 0.0
    %1105 = vmatpush2.msra.mxu0 0.0
    %1106 = vmatprep.subr.mxu0 0.0
    %1107 = vmatpush2.msra.mxu0 0.0
    %1108 = vmatprep.subr.mxu0 0.0
    %1109 = vmatpush2.msra.mxu0 0.0
    %1110 = vmatprep.subr.mxu0 0.0
    %1111 = vmatpush2.msra.mxu0 0.0
    %1112 = vmatprep.subr.mxu0 0.0
    %1113 = vmatpush2.msra.mxu0 0.0
    %1114 = vmatprep.subr.mxu0 0.0
    %1115 = vmatpush2.msra.mxu0 0.0
    %1116 = vmatprep.subr.mxu0 0.0
    %1117 = vmatpush2.msra.mxu0 0.0
    %1118 = vmatprep.subr.mxu0 0.0
    %1119 = vmatpush2.msra.mxu0 0.0
    %1120 = vmatprep.subr.mxu0 0.0
    %1121 = vmatpush2.msra.mxu0 0.0
    %1122 = vmatprep.subr.mxu0 0.0
    %1123 = vmatpush2.msra.mxu0 0.0
    %1124 = vmatprep.subr.mxu0 0.0
    %1125 = vmatpush2.msra.mxu0 0.0
    %1126 = vmatprep.subr.mxu0 0.0
    %1127 = vmatpush2.msra.mxu0 0.0
    %1128 = vmatprep.mubr.f32.mxu0 0.0
    %1129 = vmatmul.mubr.f32.gmra.mxu0 %v1059
    %v1130 = vpop.f32.mrf.mxu0
    %v1131 = vadd.f32 %v1057, %v1130
    %v1132 = vpop.f32.mrf.mxu0
    %1133 = vmatprep.mubr.f32.mxu0 0.0
    %1134 = vmatmul.mubr.f32.gmra.mxu0 %v1062
    %v1135 = vpop.f32.mrf.mxu0
    %v1136 = vadd.f32 %v1057, %v1135
    %v1137 = vpop.f32.mrf.mxu0
    %1138 = vdwg.mxu0
    %v1139 = vmul.f32 %v1131, %v189
    %v1140 = vmul.f32 %v1131, %v191
    %v1141 = vmul.f32 %v1131, %v193
    %v1142 = vmul.f32 %v1131, %v195
    %v1143 = vmul.f32 %v1136, %v189
    %v1144 = vmul.f32 %v1136, %v191
    %v1145 = vmul.f32 %v1136, %v193
    %v1146 = vmul.f32 %v1136, %v195
    %v1147 = vmul.f32 %v1131, %v209
    %v1148 = vmul.f32 %v1131, %v211
    %v1149 = vmul.f32 %v1131, %v213
    %v1150 = vmul.f32 %v1131, %v215
    %v1151 = vmul.f32 %v1136, %v209
    %v1152 = vmul.f32 %v1136, %v211
    %v1153 = vmul.f32 %v1136, %v213
    %v1154 = vmul.f32 %v1136, %v215
    %1159 = vrot.lane.b32.xlu0 %v1139, 96
    %v1160 = vpop.permute.xlu0 %1159
    %1161 = vrot.lane.b32.xlu0 %v1140, 96
    %v1162 = vpop.permute.xlu0 %1161
    %1163 = vrot.lane.b32.xlu0 %v1141, 96
    %v1164 = vpop.permute.xlu0 %1163
    %1165 = vrot.lane.b32.xlu0 %v1142, 96
    %v1166 = vpop.permute.xlu0 %1165
    %v1168 = vsel %vm102, %v1131, 0
    %v1170 = vsel %vm102, %v1160, 0
    %v1172 = vsel %vm102, %v1162, 0
    %v1174 = vsel %vm102, %v1164, 0
    %v1176 = vsel %vm102, %v1166, 0
    %1178 = vmatprep.subr.mxu0 0.0
    %1179 = vmatpush1.xpose.msra.mxu0 0.0
    %1180 = vmatprep.subr.mxu0 0.0
    %1181 = vmatpush1.xpose.msra.mxu0 0.0
    %1182 = vmatprep.subr.mxu0 0.0
    %1183 = vmatpush1.xpose.msra.mxu0 0.0
    %1184 = vmatprep.subr.mxu0 0.0
    %1185 = vmatpush1.xpose.msra.mxu0 0.0
    %1186 = vmatprep.subr.mxu0 0.0
    %1187 = vmatpush1.xpose.msra.mxu0 0.0
    %1188 = vmatprep.subr.mxu0 0.0
    %1189 = vmatpush1.xpose.msra.mxu0 0.0
    %1190 = vmatprep.subr.mxu0 0.0
    %1191 = vmatpush1.xpose.msra.mxu0 0.0
    %1192 = vmatprep.subr.mxu0 0.0
    %1193 = vmatpush1.xpose.msra.mxu0 0.0
    %1194 = vmatprep.subr.mxu0 0.0
    %1195 = vmatpush1.xpose.msra.mxu0 0.0
    %1196 = vmatprep.subr.mxu0 0.0
    %1197 = vmatpush1.xpose.msra.mxu0 0.0
    %1198 = vmatprep.subr.mxu0 0.0
    %1199 = vmatpush1.xpose.msra.mxu0 0.0
    %1200 = vmatprep.subr.mxu0 0.0
    %1201 = vmatpush1.xpose.msra.mxu0 0.0
    %1202 = vmatprep.subr.mxu0 0.0
    %1203 = vmatpush1.xpose.msra.mxu0 %v1176
    %1204 = vmatprep.subr.mxu0 0.0
    %1205 = vmatpush1.xpose.msra.mxu0 %v1174
    %1206 = vmatprep.subr.mxu0 0.0
    %1207 = vmatpush1.xpose.msra.mxu0 %v1172
    %1208 = vmatprep.subr.mxu0 0.0
    %1209 = vmatpush1.xpose.msra.mxu0 %v1170
    %1210 = vmatprep.subr.mxu0 0.0
    %1211 = vmatpush2.xpose.msra.mxu0 0.0
    %1212 = vmatprep.subr.mxu0 0.0
    %1213 = vmatpush2.xpose.msra.mxu0 0.0
    %1214 = vmatprep.subr.mxu0 0.0
    %1215 = vmatpush2.xpose.msra.mxu0 0.0
    %1216 = vmatprep.subr.mxu0 0.0
    %1217 = vmatpush2.xpose.msra.mxu0 0.0
    %1218 = vmatprep.subr.mxu0 0.0
    %1219 = vmatpush2.xpose.msra.mxu0 0.0
    %1220 = vmatprep.subr.mxu0 0.0
    %1221 = vmatpush2.xpose.msra.mxu0 0.0
    %1222 = vmatprep.subr.mxu0 0.0
    %1223 = vmatpush2.xpose.msra.mxu0 0.0
    %1224 = vmatprep.subr.mxu0 0.0
    %1225 = vmatpush2.xpose.msra.mxu0 0.0
    %1226 = vmatprep.subr.mxu0 0.0
    %1227 = vmatpush2.xpose.msra.mxu0 0.0
    %1228 = vmatprep.subr.mxu0 0.0
    %1229 = vmatpush2.xpose.msra.mxu0 0.0
    %1230 = vmatprep.subr.mxu0 0.0
    %1231 = vmatpush2.xpose.msra.mxu0 0.0
    %1232 = vmatprep.subr.mxu0 0.0
    %1233 = vmatpush2.xpose.msra.mxu0 0.0
    %1234 = vmatprep.subr.mxu0 0.0
    %1235 = vmatpush2.xpose.msra.mxu0 0.0
    %1236 = vmatprep.subr.mxu0 0.0
    %1237 = vmatpush2.xpose.msra.mxu0 0.0
    %1238 = vmatprep.subr.mxu0 0.0
    %1239 = vmatpush2.xpose.msra.mxu0 0.0
    %1240 = vmatprep.subr.mxu0 0.0
    %1241 = vmatpush2.xpose.msra.mxu0 0.0
    %1242 = vmatprep.mubr.f32.mxu0 0.0
    %1243 = vmatmul.mubr.f32.gmra.mxu0 %v1168
    %v1244 = vpop.f32.mrf.mxu0
    %v1245 = vadd.f32 0.0, %v1244
    %v1246 = vpop.f32.mrf.mxu0
    %1247 = vdwg.mxu0
    %1252 = vrot.lane.b32.xlu0 %v1143, 96
    %v1253 = vpop.permute.xlu0 %1252
    %1254 = vrot.lane.b32.xlu0 %v1144, 96
    %v1255 = vpop.permute.xlu0 %1254
    %1256 = vrot.lane.b32.xlu0 %v1145, 96
    %v1257 = vpop.permute.xlu0 %1256
    %1258 = vrot.lane.b32.xlu0 %v1146, 96
    %v1259 = vpop.permute.xlu0 %1258
    %v1261 = vsel %vm102, %v1136, 0
    %v1263 = vsel %vm102, %v1253, 0
    %v1265 = vsel %vm102, %v1255, 0
    %v1267 = vsel %vm102, %v1257, 0
    %v1269 = vsel %vm102, %v1259, 0
    %1271 = vmatprep.subr.mxu0 0.0
    %1272 = vmatpush1.xpose.msra.mxu0 0.0
    %1273 = vmatprep.subr.mxu0 0.0
    %1274 = vmatpush1.xpose.msra.mxu0 0.0
    %1275 = vmatprep.subr.mxu0 0.0
    %1276 = vmatpush1.xpose.msra.mxu0 0.0
    %1277 = vmatprep.subr.mxu0 0.0
    %1278 = vmatpush1.xpose.msra.mxu0 0.0
    %1279 = vmatprep.subr.mxu0 0.0
    %1280 = vmatpush1.xpose.msra.mxu0 0.0
    %1281 = vmatprep.subr.mxu0 0.0
    %1282 = vmatpush1.xpose.msra.mxu0 0.0
    %1283 = vmatprep.subr.mxu0 0.0
    %1284 = vmatpush1.xpose.msra.mxu0 0.0
    %1285 = vmatprep.subr.mxu0 0.0
    %1286 = vmatpush1.xpose.msra.mxu0 0.0
    %1287 = vmatprep.subr.mxu0 0.0
    %1288 = vmatpush1.xpose.msra.mxu0 0.0
    %1289 = vmatprep.subr.mxu0 0.0
    %1290 = vmatpush1.xpose.msra.mxu0 0.0
    %1291 = vmatprep.subr.mxu0 0.0
    %1292 = vmatpush1.xpose.msra.mxu0 0.0
    %1293 = vmatprep.subr.mxu0 0.0
    %1294 = vmatpush1.xpose.msra.mxu0 0.0
    %1295 = vmatprep.subr.mxu0 0.0
    %1296 = vmatpush1.xpose.msra.mxu0 %v1269
    %1297 = vmatprep.subr.mxu0 0.0
    %1298 = vmatpush1.xpose.msra.mxu0 %v1267
    %1299 = vmatprep.subr.mxu0 0.0
    %1300 = vmatpush1.xpose.msra.mxu0 %v1265
    %1301 = vmatprep.subr.mxu0 0.0
    %1302 = vmatpush1.xpose.msra.mxu0 %v1263
    %1303 = vmatprep.subr.mxu0 0.0
    %1304 = vmatpush2.xpose.msra.mxu0 0.0
    %1305 = vmatprep.subr.mxu0 0.0
    %1306 = vmatpush2.xpose.msra.mxu0 0.0
    %1307 = vmatprep.subr.mxu0 0.0
    %1308 = vmatpush2.xpose.msra.mxu0 0.0
    %1309 = vmatprep.subr.mxu0 0.0
    %1310 = vmatpush2.xpose.msra.mxu0 0.0
    %1311 = vmatprep.subr.mxu0 0.0
    %1312 = vmatpush2.xpose.msra.mxu0 0.0
    %1313 = vmatprep.subr.mxu0 0.0
    %1314 = vmatpush2.xpose.msra.mxu0 0.0
    %1315 = vmatprep.subr.mxu0 0.0
    %1316 = vmatpush2.xpose.msra.mxu0 0.0
    %1317 = vmatprep.subr.mxu0 0.0
    %1318 = vmatpush2.xpose.msra.mxu0 0.0
    %1319 = vmatprep.subr.mxu0 0.0
    %1320 = vmatpush2.xpose.msra.mxu0 0.0
    %1321 = vmatprep.subr.mxu0 0.0
    %1322 = vmatpush2.xpose.msra.mxu0 0.0
    %1323 = vmatprep.subr.mxu0 0.0
    %1324 = vmatpush2.xpose.msra.mxu0 0.0
    %1325 = vmatprep.subr.mxu0 0.0
    %1326 = vmatpush2.xpose.msra.mxu0 0.0
    %1327 = vmatprep.subr.mxu0 0.0
    %1328 = vmatpush2.xpose.msra.mxu0 0.0
    %1329 = vmatprep.subr.mxu0 0.0
    %1330 = vmatpush2.xpose.msra.mxu0 0.0
    %1331 = vmatprep.subr.mxu0 0.0
    %1332 = vmatpush2.xpose.msra.mxu0 0.0
    %1333 = vmatprep.subr.mxu0 0.0
    %1334 = vmatpush2.xpose.msra.mxu0 0.0
    %1335 = vmatprep.mubr.f32.mxu0 0.0
    %1336 = vmatmul.mubr.f32.gmra.mxu0 %v1261
    %v1337 = vpop.f32.mrf.mxu0
    %v1338 = vadd.f32 0.0, %v1337
    %v1339 = vpop.f32.mrf.mxu0
    %1340 = vdwg.mxu0
    %v1341 = vsel %vm102, %v1245, -inf
    %1342 = vmax.xlane.f32.xlu0 %v1341
    %v1343 = vpop.xlane.xlu0 %1342
    %v1344 = vsel %vm102, %v1338, -inf
    %1345 = vmax.xlane.f32.xlu0 %v1344
    %v1346 = vpop.xlane.xlu0 %1345
    %v1347 = vsub.f32 %v1245, %v1343
    %v1348 = vsub.f32 %v1338, %v1346
    %v1349 = vmul.f32 %v1347, 1.442695
    %v1350 = vpow.pop %v1349
    %v1351 = vmul.f32 %v1348, 1.442695
    %v1352 = vpow.pop %v1351
    %v1354 = vsel %vm102, %v1350, 0
    %v1357 = vsel %vm102, %v1352, 0
    %1359 = vmatprep.subr.mxu0 0.0
    %1360 = vmatpush1.msra.mxu0 0.0
    %1361 = vmatprep.subr.mxu0 0.0
    %1362 = vmatpush1.msra.mxu0 0.0
    %1363 = vmatprep.subr.mxu0 0.0
    %1364 = vmatpush1.msra.mxu0 0.0
    %1365 = vmatprep.subr.mxu0 0.0
    %1366 = vmatpush1.msra.mxu0 0.0
    %1367 = vmatprep.subr.mxu0 0.0
    %1368 = vmatpush1.msra.mxu0 0.0
    %1369 = vmatprep.subr.mxu0 0.0
    %1370 = vmatpush1.msra.mxu0 0.0
    %1371 = vmatprep.subr.mxu0 0.0
    %1372 = vmatpush1.msra.mxu0 0.0
    %1373 = vmatprep.subr.mxu0 0.0
    %1374 = vmatpush1.msra.mxu0 0.0
    %1375 = vmatprep.subr.mxu0 0.0
    %1376 = vmatpush1.msra.mxu0 0.0
    %1377 = vmatprep.subr.mxu0 0.0
    %1378 = vmatpush1.msra.mxu0 0.0
    %1379 = vmatprep.subr.mxu0 0.0
    %1380 = vmatpush1.msra.mxu0 0.0
    %1381 = vmatprep.subr.mxu0 0.0
    %1382 = vmatpush1.msra.mxu0 0.0
    %1383 = vmatprep.subr.mxu0 0.0
    %1384 = vmatpush1.msra.mxu0 %v76
    %1385 = vmatprep.subr.mxu0 0.0
    %1386 = vmatpush1.msra.mxu0 %v75
    %1387 = vmatprep.subr.mxu0 0.0
    %1388 = vmatpush1.msra.mxu0 %v74
    %1389 = vmatprep.subr.mxu0 0.0
    %1390 = vmatpush1.msra.mxu0 %v73
    %1391 = vmatprep.subr.mxu0 0.0
    %1392 = vmatpush2.msra.mxu0 0.0
    %1393 = vmatprep.subr.mxu0 0.0
    %1394 = vmatpush2.msra.mxu0 0.0
    %1395 = vmatprep.subr.mxu0 0.0
    %1396 = vmatpush2.msra.mxu0 0.0
    %1397 = vmatprep.subr.mxu0 0.0
    %1398 = vmatpush2.msra.mxu0 0.0
    %1399 = vmatprep.subr.mxu0 0.0
    %1400 = vmatpush2.msra.mxu0 0.0
    %1401 = vmatprep.subr.mxu0 0.0
    %1402 = vmatpush2.msra.mxu0 0.0
    %1403 = vmatprep.subr.mxu0 0.0
    %1404 = vmatpush2.msra.mxu0 0.0
    %1405 = vmatprep.subr.mxu0 0.0
    %1406 = vmatpush2.msra.mxu0 0.0
    %1407 = vmatprep.subr.mxu0 0.0
    %1408 = vmatpush2.msra.mxu0 0.0
    %1409 = vmatprep.subr.mxu0 0.0
    %1410 = vmatpush2.msra.mxu0 0.0
    %1411 = vmatprep.subr.mxu0 0.0
    %1412 = vmatpush2.msra.mxu0 0.0
    %1413 = vmatprep.subr.mxu0 0.0
    %1414 = vmatpush2.msra.mxu0 0.0
    %1415 = vmatprep.subr.mxu0 0.0
    %1416 = vmatpush2.msra.mxu0 0.0
    %1417 = vmatprep.subr.mxu0 0.0
    %1418 = vmatpush2.msra.mxu0 0.0
    %1419 = vmatprep.subr.mxu0 0.0
    %1420 = vmatpush2.msra.mxu0 0.0
    %1421 = vmatprep.subr.mxu0 0.0
    %1422 = vmatpush2.msra.mxu0 0.0
    %1423 = vmatprep.mubr.f32.mxu0 0.0
    %1424 = vmatmul.mubr.f32.gmra.mxu0 %v1354
    %v1425 = vpop.f32.mrf.mxu0
    %v1426 = vadd.f32 0.0, %v1425
    %v1427 = vpop.f32.mrf.mxu0
    %1428 = vmatprep.mubr.f32.mxu0 0.0
    %1429 = vmatmul.mubr.f32.gmra.mxu0 %v1357
    %v1430 = vpop.f32.mrf.mxu0
    %v1431 = vadd.f32 0.0, %v1430
    %v1432 = vpop.f32.mrf.mxu0
    %1433 = vdwg.mxu0
    %v1434 = vrcp.pop %v1426
    %v1435 = vmul.f32 %v1350, %v1434
    %v1436 = vrcp.pop %v1431
    %v1437 = vmul.f32 %v1352, %v1436
    %1442 = vrot.lane.b32.xlu0 %v1147, 64
    %v1443 = vpop.permute.xlu0 %1442
    %1444 = vrot.lane.b32.xlu0 %v1148, 64
    %v1445 = vpop.permute.xlu0 %1444
    %1446 = vrot.lane.b32.xlu0 %v1149, 64
    %v1447 = vpop.permute.xlu0 %1446
    %1448 = vrot.lane.b32.xlu0 %v1150, 64
    %v1449 = vpop.permute.xlu0 %1448
    %v1455 = vsel %vm102, %v1435, 0
    %1457 = vmatprep.subr.mxu0 0.0
    %1458 = vmatpush1.msra.mxu0 0.0
    %1459 = vmatprep.subr.mxu0 0.0
    %1460 = vmatpush1.msra.mxu0 0.0
    %1461 = vmatprep.subr.mxu0 0.0
    %1462 = vmatpush1.msra.mxu0 0.0
    %1463 = vmatprep.subr.mxu0 0.0
    %1464 = vmatpush1.msra.mxu0 0.0
    %1465 = vmatprep.subr.mxu0 0.0
    %1466 = vmatpush1.msra.mxu0 0.0
    %1467 = vmatprep.subr.mxu0 0.0
    %1468 = vmatpush1.msra.mxu0 0.0
    %1469 = vmatprep.subr.mxu0 0.0
    %1470 = vmatpush1.msra.mxu0 0.0
    %1471 = vmatprep.subr.mxu0 0.0
    %1472 = vmatpush1.msra.mxu0 0.0
    %1473 = vmatprep.subr.mxu0 0.0
    %1474 = vmatpush1.msra.mxu0 0.0
    %1475 = vmatprep.subr.mxu0 0.0
    %1476 = vmatpush1.msra.mxu0 0.0
    %1477 = vmatprep.subr.mxu0 0.0
    %1478 = vmatpush1.msra.mxu0 0.0
    %1479 = vmatprep.subr.mxu0 0.0
    %1480 = vmatpush1.msra.mxu0 0.0
    %1481 = vmatprep.subr.mxu0 0.0
    %1482 = vmatpush1.msra.mxu0 %v1449
    %1483 = vmatprep.subr.mxu0 0.0
    %1484 = vmatpush1.msra.mxu0 %v1447
    %1485 = vmatprep.subr.mxu0 0.0
    %1486 = vmatpush1.msra.mxu0 %v1445
    %1487 = vmatprep.subr.mxu0 0.0
    %1488 = vmatpush1.msra.mxu0 %v1443
    %1489 = vmatprep.subr.mxu0 0.0
    %1490 = vmatpush2.msra.mxu0 0.0
    %1491 = vmatprep.subr.mxu0 0.0
    %1492 = vmatpush2.msra.mxu0 0.0
    %1493 = vmatprep.subr.mxu0 0.0
    %1494 = vmatpush2.msra.mxu0 0.0
    %1495 = vmatprep.subr.mxu0 0.0
    %1496 = vmatpush2.msra.mxu0 0.0
    %1497 = vmatprep.subr.mxu0 0.0
    %1498 = vmatpush2.msra.mxu0 0.0
    %1499 = vmatprep.subr.mxu0 0.0
    %1500 = vmatpush2.msra.mxu0 0.0
    %1501 = vmatprep.subr.mxu0 0.0
    %1502 = vmatpush2.msra.mxu0 0.0
    %1503 = vmatprep.subr.mxu0 0.0
    %1504 = vmatpush2.msra.mxu0 0.0
    %1505 = vmatprep.subr.mxu0 0.0
    %1506 = vmatpush2.msra.mxu0 0.0
    %1507 = vmatprep.subr.mxu0 0.0
    %1508 = vmatpush2.msra.mxu0 0.0
    %1509 = vmatprep.subr.mxu0 0.0
    %1510 = vmatpush2.msra.mxu0 0.0
    %1511 = vmatprep.subr.mxu0 0.0
    %1512 = vmatpush2.msra.mxu0 0.0
    %1513 = vmatprep.subr.mxu0 0.0
    %1514 = vmatpush2.msra.mxu0 0.0
    %1515 = vmatprep.subr.mxu0 0.0
    %1516 = vmatpush2.msra.mxu0 0.0
    %1517 = vmatprep.subr.mxu0 0.0
    %1518 = vmatpush2.msra.mxu0 0.0
    %1519 = vmatprep.subr.mxu0 0.0
    %1520 = vmatpush2.msra.mxu0 0.0
    %1521 = vmatprep.mubr.f32.mxu0 0.0
    %1522 = vmatmul.mubr.f32.gmra.mxu0 %v1455
    %v1523 = vpop.f32.mrf.mxu0
    %v1524 = vadd.f32 0.0, %v1523
    %v1525 = vpop.f32.mrf.mxu0
    %1526 = vdwg.mxu0
    %1531 = vrot.lane.b32.xlu0 %v1151, 64
    %v1532 = vpop.permute.xlu0 %1531
    %1533 = vrot.lane.b32.xlu0 %v1152, 64
    %v1534 = vpop.permute.xlu0 %1533
    %1535 = vrot.lane.b32.xlu0 %v1153, 64
    %v1536 = vpop.permute.xlu0 %1535
    %1537 = vrot.lane.b32.xlu0 %v1154, 64
    %v1538 = vpop.permute.xlu0 %1537
    %v1544 = vsel %vm102, %v1437, 0
    %1546 = vmatprep.subr.mxu0 0.0
    %1547 = vmatpush1.msra.mxu0 0.0
    %1548 = vmatprep.subr.mxu0 0.0
    %1549 = vmatpush1.msra.mxu0 0.0
    %1550 = vmatprep.subr.mxu0 0.0
    %1551 = vmatpush1.msra.mxu0 0.0
    %1552 = vmatprep.subr.mxu0 0.0
    %1553 = vmatpush1.msra.mxu0 0.0
    %1554 = vmatprep.subr.mxu0 0.0
    %1555 = vmatpush1.msra.mxu0 0.0
    %1556 = vmatprep.subr.mxu0 0.0
    %1557 = vmatpush1.msra.mxu0 0.0
    %1558 = vmatprep.subr.mxu0 0.0
    %1559 = vmatpush1.msra.mxu0 0.0
    %1560 = vmatprep.subr.mxu0 0.0
    %1561 = vmatpush1.msra.mxu0 0.0
    %1562 = vmatprep.subr.mxu0 0.0
    %1563 = vmatpush1.msra.mxu0 0.0
    %1564 = vmatprep.subr.mxu0 0.0
    %1565 = vmatpush1.msra.mxu0 0.0
    %1566 = vmatprep.subr.mxu0 0.0
    %1567 = vmatpush1.msra.mxu0 0.0
    %1568 = vmatprep.subr.mxu0 0.0
    %1569 = vmatpush1.msra.mxu0 0.0
    %1570 = vmatprep.subr.mxu0 0.0
    %1571 = vmatpush1.msra.mxu0 %v1538
    %1572 = vmatprep.subr.mxu0 0.0
    %1573 = vmatpush1.msra.mxu0 %v1536
    %1574 = vmatprep.subr.mxu0 0.0
    %1575 = vmatpush1.msra.mxu0 %v1534
    %1576 = vmatprep.subr.mxu0 0.0
    %1577 = vmatpush1.msra.mxu0 %v1532
    %1578 = vmatprep.subr.mxu0 0.0
    %1579 = vmatpush2.msra.mxu0 0.0
    %1580 = vmatprep.subr.mxu0 0.0
    %1581 = vmatpush2.msra.mxu0 0.0
    %1582 = vmatprep.subr.mxu0 0.0
    %1583 = vmatpush2.msra.mxu0 0.0
    %1584 = vmatprep.subr.mxu0 0.0
    %1585 = vmatpush2.msra.mxu0 0.0
    %1586 = vmatprep.subr.mxu0 0.0
    %1587 = vmatpush2.msra.mxu0 0.0
    %1588 = vmatprep.subr.mxu0 0.0
    %1589 = vmatpush2.msra.mxu0 0.0
    %1590 = vmatprep.subr.mxu0 0.0
    %1591 = vmatpush2.msra.mxu0 0.0
    %1592 = vmatprep.subr.mxu0 0.0
    %1593 = vmatpush2.msra.mxu0 0.0
    %1594 = vmatprep.subr.mxu0 0.0
    %1595 = vmatpush2.msra.mxu0 0.0
    %1596 = vmatprep.subr.mxu0 0.0
    %1597 = vmatpush2.msra.mxu0 0.0
    %1598 = vmatprep.subr.mxu0 0.0
    %1599 = vmatpush2.msra.mxu0 0.0
    %1600 = vmatprep.subr.mxu0 0.0
    %1601 = vmatpush2.msra.mxu0 0.0
    %1602 = vmatprep.subr.mxu0 0.0
    %1603 = vmatpush2.msra.mxu0 0.0
    %1604 = vmatprep.subr.mxu0 0.0
    %1605 = vmatpush2.msra.mxu0 0.0
    %1606 = vmatprep.subr.mxu0 0.0
    %1607 = vmatpush2.msra.mxu0 0.0
    %1608 = vmatprep.subr.mxu0 0.0
    %1609 = vmatpush2.msra.mxu0 0.0
    %1610 = vmatprep.mubr.f32.mxu0 0.0
    %1611 = vmatmul.mubr.f32.gmra.mxu0 %v1544
    %v1612 = vpop.f32.mrf.mxu0
    %v1613 = vadd.f32 0.0, %v1612
    %v1614 = vpop.f32.mrf.mxu0
    %1615 = vdwg.mxu0
    %v1616 = vlaneseq
    %v1617 = vshrl.u32 %v1616, 7
    %v1618 = vsub.s32 1, %v1617
    %v1619 = vrot.slane %v1053, %v1618
    %v1621 = vsel %vm102, %v1524, 0
    %v1624 = vsel %vm102, %v1613, 0
    %1626 = vmatprep.subr.mxu0 0.0
    %1627 = vmatpush1.msra.mxu0 0.0
    %1628 = vmatprep.subr.mxu0 0.0
    %1629 = vmatpush1.msra.mxu0 0.0
    %1630 = vmatprep.subr.mxu0 0.0
    %1631 = vmatpush1.msra.mxu0 0.0
    %1632 = vmatprep.subr.mxu0 0.0
    %1633 = vmatpush1.msra.mxu0 0.0
    %1634 = vmatprep.subr.mxu0 0.0
    %1635 = vmatpush1.msra.mxu0 0.0
    %1636 = vmatprep.subr.mxu0 0.0
    %1637 = vmatpush1.msra.mxu0 0.0
    %1638 = vmatprep.subr.mxu0 0.0
    %1639 = vmatpush1.msra.mxu0 0.0
    %1640 = vmatprep.subr.mxu0 0.0
    %1641 = vmatpush1.msra.mxu0 0.0
    %1642 = vmatprep.subr.mxu0 0.0
    %1643 = vmatpush1.msra.mxu0 0.0
    %1644 = vmatprep.subr.mxu0 0.0
    %1645 = vmatpush1.msra.mxu0 0.0
    %1646 = vmatprep.subr.mxu0 0.0
    %1647 = vmatpush1.msra.mxu0 0.0
    %1648 = vmatprep.subr.mxu0 0.0
    %1649 = vmatpush1.msra.mxu0 0.0
    %1650 = vmatprep.subr.mxu0 0.0
    %1651 = vmatpush1.msra.mxu0 %v1037
    %1652 = vmatprep.subr.mxu0 0.0
    %1653 = vmatpush1.msra.mxu0 %v1036
    %1654 = vmatprep.subr.mxu0 0.0
    %1655 = vmatpush1.msra.mxu0 %v1035
    %1656 = vmatprep.subr.mxu0 0.0
    %1657 = vmatpush1.msra.mxu0 %v1034
    %1658 = vmatprep.subr.mxu0 0.0
    %1659 = vmatpush2.msra.mxu0 0.0
    %1660 = vmatprep.subr.mxu0 0.0
    %1661 = vmatpush2.msra.mxu0 0.0
    %1662 = vmatprep.subr.mxu0 0.0
    %1663 = vmatpush2.msra.mxu0 0.0
    %1664 = vmatprep.subr.mxu0 0.0
    %1665 = vmatpush2.msra.mxu0 0.0
    %1666 = vmatprep.subr.mxu0 0.0
    %1667 = vmatpush2.msra.mxu0 0.0
    %1668 = vmatprep.subr.mxu0 0.0
    %1669 = vmatpush2.msra.mxu0 0.0
    %1670 = vmatprep.subr.mxu0 0.0
    %1671 = vmatpush2.msra.mxu0 0.0
    %1672 = vmatprep.subr.mxu0 0.0
    %1673 = vmatpush2.msra.mxu0 0.0
    %1674 = vmatprep.subr.mxu0 0.0
    %1675 = vmatpush2.msra.mxu0 0.0
    %1676 = vmatprep.subr.mxu0 0.0
    %1677 = vmatpush2.msra.mxu0 0.0
    %1678 = vmatprep.subr.mxu0 0.0
    %1679 = vmatpush2.msra.mxu0 0.0
    %1680 = vmatprep.subr.mxu0 0.0
    %1681 = vmatpush2.msra.mxu0 0.0
    %1682 = vmatprep.subr.mxu0 0.0
    %1683 = vmatpush2.msra.mxu0 0.0
    %1684 = vmatprep.subr.mxu0 0.0
    %1685 = vmatpush2.msra.mxu0 0.0
    %1686 = vmatprep.subr.mxu0 0.0
    %1687 = vmatpush2.msra.mxu0 0.0
    %1688 = vmatprep.subr.mxu0 0.0
    %1689 = vmatpush2.msra.mxu0 0.0
    %1690 = vmatprep.mubr.f32.mxu0 0.0
    %1691 = vmatmul.mubr.f32.gmra.mxu0 %v1621
    %v1692 = vpop.f32.mrf.mxu0
    %v1693 = vadd.f32 %v1619, %v1692
    %v1694 = vpop.f32.mrf.mxu0
    %1695 = vmatprep.mubr.f32.mxu0 0.0
    %1696 = vmatmul.mubr.f32.gmra.mxu0 %v1624
    %v1697 = vpop.f32.mrf.mxu0
    %v1698 = vadd.f32 %v1619, %v1697
    %v1699 = vpop.f32.mrf.mxu0
    %1700 = vdwg.mxu0
    %v1701 = vadd.f32 %v1026, %v1693
    %v1702 = vadd.f32 %v1027, %v1698
    %v1703 = vsel %vm102, %v1701, 0.0
    %1704 = vadd.xlane.f32.xlu0 %v1703
    %v1705 = vpop.xlane.xlu0 %1704
    %v1706 = vsel %vm102, %v1702, 0.0
    %1707 = vadd.xlane.f32.xlu0 %v1706
    %v1708 = vpop.xlane.xlu0 %1707
    %v1709 = vmul.f32 %v1705, %v782
    %v1710 = vmul.f32 %v1708, %v782
    %v1711 = vsub.f32 %v1701, %v1709
    %v1712 = vsub.f32 %v1702, %v1710
    %v1713 = vmul.f32 %v1711, %v1711
    %v1714 = vmul.f32 %v1712, %v1712
    %v1715 = vsel %vm102, %v1713, 0.0
    %1716 = vadd.xlane.f32.xlu0 %v1715
    %v1717 = vpop.xlane.xlu0 %1716
    %v1718 = vsel %vm102, %v1714, 0.0
    %1719 = vadd.xlane.f32.xlu0 %v1718
    %v1720 = vpop.xlane.xlu0 %1719
    %v1721 = vmul.f32 %v1717, %v782
    %v1722 = vmul.f32 %v1720, %v782
    %v1723 = vadd.f32 %v1721, 1e-05
    %v1724 = vadd.f32 %v1722, 1e-05
    %v1725 = vrsqrt.pop %v1723
    %v1726 = vrsqrt.pop %v1724
    %v1727 = vmul.f32 %v1711, %v1725
    %v1728 = vmul.f32 %v1712, %v1726
    %v1729 = vlaneseq
    %v1730 = vshrl.u32 %v1729, 7
    %v1731 = vsub.s32 4, %v1730
    %v1732 = vrot.slane %v1053, %v1731
    %v1733 = vmul.f32 %v1727, %v1732
    %v1734 = vmul.f32 %v1728, %v1732
    %v1735 = vlaneseq
    %v1736 = vshrl.u32 %v1735, 7
    %v1737 = vsub.s32 5, %v1736
    %v1738 = vrot.slane %v1053, %v1737
    %v1739 = vadd.f32 %v1733, %v1738
    %v1740 = vadd.f32 %v1734, %v1738
    %v1741 = vlaneseq
    %v1742 = vshrl.u32 %v1741, 7
    %v1743 = vsub.s32 2, %v1742
    %v1744 = vrot.slane %v1053, %v1743
    %v1746 = vsel %vm102, %v1739, 0
    %v1749 = vsel %vm102, %v1740, 0
    %1751 = vmatprep.subr.mxu0 0.0
    %1752 = vmatpush1.msra.mxu0 0.0
    %1753 = vmatprep.subr.mxu0 0.0
    %1754 = vmatpush1.msra.mxu0 0.0
    %1755 = vmatprep.subr.mxu0 0.0
    %1756 = vmatpush1.msra.mxu0 0.0
    %1757 = vmatprep.subr.mxu0 0.0
    %1758 = vmatpush1.msra.mxu0 0.0
    %1759 = vmatprep.subr.mxu0 0.0
    %1760 = vmatpush1.msra.mxu0 0.0
    %1761 = vmatprep.subr.mxu0 0.0
    %1762 = vmatpush1.msra.mxu0 0.0
    %1763 = vmatprep.subr.mxu0 0.0
    %1764 = vmatpush1.msra.mxu0 0.0
    %1765 = vmatprep.subr.mxu0 0.0
    %1766 = vmatpush1.msra.mxu0 0.0
    %1767 = vmatprep.subr.mxu0 0.0
    %1768 = vmatpush1.msra.mxu0 0.0
    %1769 = vmatprep.subr.mxu0 0.0
    %1770 = vmatpush1.msra.mxu0 0.0
    %1771 = vmatprep.subr.mxu0 0.0
    %1772 = vmatpush1.msra.mxu0 0.0
    %1773 = vmatprep.subr.mxu0 0.0
    %1774 = vmatpush1.msra.mxu0 0.0
    %1775 = vmatprep.subr.mxu0 0.0
    %1776 = vmatpush1.msra.mxu0 %v1042
    %1777 = vmatprep.subr.mxu0 0.0
    %1778 = vmatpush1.msra.mxu0 %v1041
    %1779 = vmatprep.subr.mxu0 0.0
    %1780 = vmatpush1.msra.mxu0 %v1040
    %1781 = vmatprep.subr.mxu0 0.0
    %1782 = vmatpush1.msra.mxu0 %v1039
    %1783 = vmatprep.subr.mxu0 0.0
    %1784 = vmatpush2.msra.mxu0 0.0
    %1785 = vmatprep.subr.mxu0 0.0
    %1786 = vmatpush2.msra.mxu0 0.0
    %1787 = vmatprep.subr.mxu0 0.0
    %1788 = vmatpush2.msra.mxu0 0.0
    %1789 = vmatprep.subr.mxu0 0.0
    %1790 = vmatpush2.msra.mxu0 0.0
    %1791 = vmatprep.subr.mxu0 0.0
    %1792 = vmatpush2.msra.mxu0 0.0
    %1793 = vmatprep.subr.mxu0 0.0
    %1794 = vmatpush2.msra.mxu0 0.0
    %1795 = vmatprep.subr.mxu0 0.0
    %1796 = vmatpush2.msra.mxu0 0.0
    %1797 = vmatprep.subr.mxu0 0.0
    %1798 = vmatpush2.msra.mxu0 0.0
    %1799 = vmatprep.subr.mxu0 0.0
    %1800 = vmatpush2.msra.mxu0 0.0
    %1801 = vmatprep.subr.mxu0 0.0
    %1802 = vmatpush2.msra.mxu0 0.0
    %1803 = vmatprep.subr.mxu0 0.0
    %1804 = vmatpush2.msra.mxu0 0.0
    %1805 = vmatprep.subr.mxu0 0.0
    %1806 = vmatpush2.msra.mxu0 0.0
    %1807 = vmatprep.subr.mxu0 0.0
    %1808 = vmatpush2.msra.mxu0 0.0
    %1809 = vmatprep.subr.mxu0 0.0
    %1810 = vmatpush2.msra.mxu0 0.0
    %1811 = vmatprep.subr.mxu0 0.0
    %1812 = vmatpush2.msra.mxu0 0.0
    %1813 = vmatprep.subr.mxu0 0.0
    %1814 = vmatpush2.msra.mxu0 0.0
    %1815 = vmatprep.mubr.f32.mxu0 0.0
    %1816 = vmatmul.mubr.f32.gmra.mxu0 %v1746
    %v1817 = vpop.f32.mrf.mxu0
    %v1818 = vadd.f32 %v1744, %v1817
    %v1819 = vpop.f32.mrf.mxu0
    %1820 = vmatprep.mubr.f32.mxu0 0.0
    %1821 = vmatmul.mubr.f32.gmra.mxu0 %v1749
    %v1822 = vpop.f32.mrf.mxu0
    %v1823 = vadd.f32 %v1744, %v1822
    %v1824 = vpop.f32.mrf.mxu0
    %1825 = vdwg.mxu0
    %v1826 = vmax.f32 %v1818, 0.0
    %v1827 = vmax.f32 %v1823, 0.0
    %v1828 = vlaneseq
    %v1829 = vshrl.u32 %v1828, 7
    %v1830 = vsub.s32 3, %v1829
    %v1831 = vrot.slane %v1053, %v1830
    %v1833 = vsel %vm906, %v1826, 0
    %v1836 = vsel %vm906, %v1827, 0
    %1838 = vmatprep.subr.mxu0 0.0
    %1839 = vmatpush1.msra.mxu0 0.0
    %1840 = vmatprep.subr.mxu0 0.0
    %1841 = vmatpush1.msra.mxu0 0.0
    %1842 = vmatprep.subr.mxu0 0.0
    %1843 = vmatpush1.msra.mxu0 0.0
    %1844 = vmatprep.subr.mxu0 0.0
    %1845 = vmatpush1.msra.mxu0 0.0
    %1846 = vmatprep.subr.mxu0 0.0
    %1847 = vmatpush1.msra.mxu0 0.0
    %1848 = vmatprep.subr.mxu0 0.0
    %1849 = vmatpush1.msra.mxu0 0.0
    %1850 = vmatprep.subr.mxu0 0.0
    %1851 = vmatpush1.msra.mxu0 0.0
    %1852 = vmatprep.subr.mxu0 0.0
    %1853 = vmatpush1.msra.mxu0 0.0
    %1854 = vmatprep.subr.mxu0 0.0
    %1855 = vmatpush1.msra.mxu0 %v1051
    %1856 = vmatprep.subr.mxu0 0.0
    %1857 = vmatpush1.msra.mxu0 %v1050
    %1858 = vmatprep.subr.mxu0 0.0
    %1859 = vmatpush1.msra.mxu0 %v1049
    %1860 = vmatprep.subr.mxu0 0.0
    %1861 = vmatpush1.msra.mxu0 %v1048
    %1862 = vmatprep.subr.mxu0 0.0
    %1863 = vmatpush1.msra.mxu0 %v1047
    %1864 = vmatprep.subr.mxu0 0.0
    %1865 = vmatpush1.msra.mxu0 %v1046
    %1866 = vmatprep.subr.mxu0 0.0
    %1867 = vmatpush1.msra.mxu0 %v1045
    %1868 = vmatprep.subr.mxu0 0.0
    %1869 = vmatpush1.msra.mxu0 %v1044
    %1870 = vmatprep.subr.mxu0 0.0
    %1871 = vmatpush2.msra.mxu0 0.0
    %1872 = vmatprep.subr.mxu0 0.0
    %1873 = vmatpush2.msra.mxu0 0.0
    %1874 = vmatprep.subr.mxu0 0.0
    %1875 = vmatpush2.msra.mxu0 0.0
    %1876 = vmatprep.subr.mxu0 0.0
    %1877 = vmatpush2.msra.mxu0 0.0
    %1878 = vmatprep.subr.mxu0 0.0
    %1879 = vmatpush2.msra.mxu0 0.0
    %1880 = vmatprep.subr.mxu0 0.0
    %1881 = vmatpush2.msra.mxu0 0.0
    %1882 = vmatprep.subr.mxu0 0.0
    %1883 = vmatpush2.msra.mxu0 0.0
    %1884 = vmatprep.subr.mxu0 0.0
    %1885 = vmatpush2.msra.mxu0 0.0
    %1886 = vmatprep.subr.mxu0 0.0
    %1887 = vmatpush2.msra.mxu0 0.0
    %1888 = vmatprep.subr.mxu0 0.0
    %1889 = vmatpush2.msra.mxu0 0.0
    %1890 = vmatprep.subr.mxu0 0.0
    %1891 = vmatpush2.msra.mxu0 0.0
    %1892 = vmatprep.subr.mxu0 0.0
    %1893 = vmatpush2.msra.mxu0 0.0
    %1894 = vmatprep.subr.mxu0 0.0
    %1895 = vmatpush2.msra.mxu0 0.0
    %1896 = vmatprep.subr.mxu0 0.0
    %1897 = vmatpush2.msra.mxu0 0.0
    %1898 = vmatprep.subr.mxu0 0.0
    %1899 = vmatpush2.msra.mxu0 0.0
    %1900 = vmatprep.subr.mxu0 0.0
    %1901 = vmatpush2.msra.mxu0 0.0
    %1902 = vmatprep.mubr.f32.mxu0 0.0
    %1903 = vmatmul.mubr.f32.gmra.mxu0 %v1833
    %v1904 = vpop.f32.mrf.mxu0
    %v1905 = vadd.f32 %v1831, %v1904
    %v1906 = vpop.f32.mrf.mxu0
    %1907 = vmatprep.mubr.f32.mxu0 0.0
    %1908 = vmatmul.mubr.f32.gmra.mxu0 %v1836
    %v1909 = vpop.f32.mrf.mxu0
    %v1910 = vadd.f32 %v1831, %v1909
    %v1911 = vpop.f32.mrf.mxu0
    %1912 = vdwg.mxu0
    %v1913 = vadd.f32 %v1739, %v1905
    %v1914 = vadd.f32 %v1740, %v1910
    %v1915 = vsel %vm102, %v1913, 0.0
    %1916 = vadd.xlane.f32.xlu0 %v1915
    %v1917 = vpop.xlane.xlu0 %1916
    %v1918 = vsel %vm102, %v1914, 0.0
    %1919 = vadd.xlane.f32.xlu0 %v1918
    %v1920 = vpop.xlane.xlu0 %1919
    %v1921 = vmul.f32 %v1917, %v782
    %v1922 = vmul.f32 %v1920, %v782
    %v1923 = vsub.f32 %v1913, %v1921
    %v1924 = vsub.f32 %v1914, %v1922
    %v1925 = vmul.f32 %v1923, %v1923
    %v1926 = vmul.f32 %v1924, %v1924
    %v1927 = vsel %vm102, %v1925, 0.0
    %1928 = vadd.xlane.f32.xlu0 %v1927
    %v1929 = vpop.xlane.xlu0 %1928
    %v1930 = vsel %vm102, %v1926, 0.0
    %1931 = vadd.xlane.f32.xlu0 %v1930
    %v1932 = vpop.xlane.xlu0 %1931
    %v1933 = vmul.f32 %v1929, %v782
    %v1934 = vmul.f32 %v1932, %v782
    %v1935 = vadd.f32 %v1933, 1e-05
    %v1936 = vadd.f32 %v1934, 1e-05
    %v1937 = vrsqrt.pop %v1935
    %v1938 = vrsqrt.pop %v1936
    %v1939 = vmul.f32 %v1923, %v1937
    %v1940 = vmul.f32 %v1924, %v1938
    %v1941 = vlaneseq
    %v1942 = vshrl.u32 %v1941, 7
    %v1943 = vsub.s32 6, %v1942
    %v1944 = vrot.slane %v1053, %v1943
    %v1945 = vmul.f32 %v1939, %v1944
    %v1946 = vmul.f32 %v1940, %v1944
    %v1947 = vlaneseq
    %v1948 = vshrl.u32 %v1947, 7
    %v1949 = vsub.s32 7, %v1948
    %v1950 = vrot.slane %v1053, %v1949
    %v1951 = vadd.f32 %v1945, %v1950
    %v1952 = vadd.f32 %v1946, %v1950
    %v1954 = vrot.slane %v1952, 7
    %vm1956 = vcmask 1040384
    %v1957 = vsel %vm1956, %v1951, %v1954
    %v1958 = vld [vmem:[%s6] sm:$0xff]
    %v1959 = vld [vmem:[%s6 + $0x8] sm:$0xff]
    %v1960 = vld [vmem:[%s6 + $0x10] sm:$0xff]
    %v1961 = vld [vmem:[%s6 + $0x18] sm:$0xff]
    %v1962 = vld [vmem:[#allocation4] sm:$0x1]
    %v1964 = vlaneseq
    %v1965 = vshrl.u32 %v1964, 7
    %v1966 = vsub.s32 0, %v1965
    %v1967 = vrot.slane %v1962, %v1966
    %v1970 = vsel %vm102, %v1957, 0
    %1972 = vmatprep.subr.mxu0 0.0
    %1973 = vmatpush1.msra.mxu0 0.0
    %1974 = vmatprep.subr.mxu0 0.0
    %1975 = vmatpush1.msra.mxu0 0.0
    %1976 = vmatprep.subr.mxu0 0.0
    %1977 = vmatpush1.msra.mxu0 0.0
    %1978 = vmatprep.subr.mxu0 0.0
    %1979 = vmatpush1.msra.mxu0 0.0
    %1980 = vmatprep.subr.mxu0 0.0
    %1981 = vmatpush1.msra.mxu0 0.0
    %1982 = vmatprep.subr.mxu0 0.0
    %1983 = vmatpush1.msra.mxu0 0.0
    %1984 = vmatprep.subr.mxu0 0.0
    %1985 = vmatpush1.msra.mxu0 0.0
    %1986 = vmatprep.subr.mxu0 0.0
    %1987 = vmatpush1.msra.mxu0 0.0
    %1988 = vmatprep.subr.mxu0 0.0
    %1989 = vmatpush1.msra.mxu0 0.0
    %1990 = vmatprep.subr.mxu0 0.0
    %1991 = vmatpush1.msra.mxu0 0.0
    %1992 = vmatprep.subr.mxu0 0.0
    %1993 = vmatpush1.msra.mxu0 0.0
    %1994 = vmatprep.subr.mxu0 0.0
    %1995 = vmatpush1.msra.mxu0 0.0
    %1996 = vmatprep.subr.mxu0 0.0
    %1997 = vmatpush1.msra.mxu0 %v1961
    %1998 = vmatprep.subr.mxu0 0.0
    %1999 = vmatpush1.msra.mxu0 %v1960
    %2000 = vmatprep.subr.mxu0 0.0
    %2001 = vmatpush1.msra.mxu0 %v1959
    %2002 = vmatprep.subr.mxu0 0.0
    %2003 = vmatpush1.msra.mxu0 %v1958
    %2004 = vmatprep.subr.mxu0 0.0
    %2005 = vmatpush2.msra.mxu0 0.0
    %2006 = vmatprep.subr.mxu0 0.0
    %2007 = vmatpush2.msra.mxu0 0.0
    %2008 = vmatprep.subr.mxu0 0.0
    %2009 = vmatpush2.msra.mxu0 0.0
    %2010 = vmatprep.subr.mxu0 0.0
    %2011 = vmatpush2.msra.mxu0 0.0
    %2012 = vmatprep.subr.mxu0 0.0
    %2013 = vmatpush2.msra.mxu0 0.0
    %2014 = vmatprep.subr.mxu0 0.0
    %2015 = vmatpush2.msra.mxu0 0.0
    %2016 = vmatprep.subr.mxu0 0.0
    %2017 = vmatpush2.msra.mxu0 0.0
    %2018 = vmatprep.subr.mxu0 0.0
    %2019 = vmatpush2.msra.mxu0 0.0
    %2020 = vmatprep.subr.mxu0 0.0
    %2021 = vmatpush2.msra.mxu0 0.0
    %2022 = vmatprep.subr.mxu0 0.0
    %2023 = vmatpush2.msra.mxu0 0.0
    %2024 = vmatprep.subr.mxu0 0.0
    %2025 = vmatpush2.msra.mxu0 0.0
    %2026 = vmatprep.subr.mxu0 0.0
    %2027 = vmatpush2.msra.mxu0 0.0
    %2028 = vmatprep.subr.mxu0 0.0
    %2029 = vmatpush2.msra.mxu0 0.0
    %2030 = vmatprep.subr.mxu0 0.0
    %2031 = vmatpush2.msra.mxu0 0.0
    %2032 = vmatprep.subr.mxu0 0.0
    %2033 = vmatpush2.msra.mxu0 0.0
    %2034 = vmatprep.subr.mxu0 0.0
    %2035 = vmatpush2.msra.mxu0 0.0
    %2036 = vmatprep.mubr.f32.mxu0 0.0
    %2037 = vmatmul.mubr.f32.gmra.mxu0 %v1970
    %v2038 = vpop.f32.mrf.mxu0
    %v2039 = vadd.f32 %v1967, %v2038
    %v2040 = vpop.f32.mrf.mxu0
    %2041 = vdwg.mxu0
    %2043 = vrot.lane.b32.xlu0 %v2039, 32
    %v2044 = vpop.permute.xlu0 %2043
    %v2046 = vsel %vm102, %v1957, %v2044
    %vm2047 = vcmask 517120
    %2048 = vst.msk [vmem:[%s8] sm:$0x3] %vm2047, %v2046
    // Predicated region
    $region42: #{vae_transformer_encoder.1} parent=1 // pred_check
      _
    $region43: #{vae_transformer_encoder.1} parent=1 // pred_check_branch
      %2050 = sbr.rel (0) target = $region45
    $region44: #{vae_transformer_encoder.1} parent=1 // pred_region
      _
    $region45: #{vae_transformer_encoder.1} parent=1 // pred_fallthru
      _
    // Predicated region
    $region46: #{vae_transformer_encoder.1} parent=1 // pred_check
      _
    $region47: #{vae_transformer_encoder.1} parent=1 // pred_check_branch
      %2052 = sbr.rel (0) target = $region49
    $region48: #{vae_transformer_encoder.1} parent=1 // pred_region
      _
    $region49: #{vae_transformer_encoder.1} parent=1 // pred_fallthru
      _
    %2053 = vsyncpa [#allocation3], 1
    %2054 = vsyncpa [#allocation5], 1

</llo_original>
